<compile_context>
chip_gen: v6e
topology: v6e:2x2x1
jax: 0.10.0
libtpu: 0.0.40
codegen_flags: <defaults>
</compile_context>

<pallas_src>
import functools

import jax
import jax.numpy as jnp
import numpy as np
from jax.experimental import pallas as pl
from jax.experimental.pallas import tpu as pltpu

_LANE = 128
# Above the 16 MiB (v5e) / 32 MiB (v6e, v7x) scoped defaults, below v7x's
# 64 MiB physical VMEM.
_VMEM_LIMIT = 48 * 1024 * 1024


def _round_up(x, m):
    return ((x + m - 1) // m) * m


def _o_tile(n_out):
    """Out-channels processed per biaffine grid step."""
    return min(n_out, 8)


# --------------------------------------------------------------------------
# Kernel 1: fused 4-head, 2-layer MLP  (Linear -> GELU -> Linear -> GELU)
#   x (tm, Din_p) @ w1_all (Din_p, 4*Hp)  ->  GELU  ->  4x (Hp, Hp) matmuls
# --------------------------------------------------------------------------
def _fused_mlp_kernel(x_ref, w1_ref, b1_ref, w2_ref, b2_ref, o_ref, *, hp, n_heads):
    x = x_ref[...]                                                  # (tm, Din_p) bf16
    h = jnp.dot(x, w1_ref[...], preferred_element_type=jnp.float32) + b1_ref[...]
    # TODO(synk): PyTorch nn.GELU() default is the exact erf GELU; the tanh
    # approximation is used here (erf is not guaranteed to lower on all Mosaic
    # versions).
    h = jax.nn.gelu(h).astype(x_ref.dtype)                          # (tm, 4*Hp) bf16
    for k in range(n_heads):
        hk = h[:, k * hp:(k + 1) * hp]                              # static 128-aligned slice
        yk = (jnp.dot(hk, w2_ref[k], preferred_element_type=jnp.float32)
              + b2_ref[:, k * hp:(k + 1) * hp])
        o_ref[:, k * hp:(k + 1) * hp] = jax.nn.gelu(yk).astype(o_ref.dtype)


def fused_mlp(x, w1_all, b1_all, w2_all, b2_all, *, tm_max=256):
    """x: (T, Din_p) bf16 -> (T_pad, 4*Hp) bf16 slab (heads concatenated on lanes).

    tm_max=256 matches the v6e/v7x 256-wide MXU; 128 already saturates v5e.
    """
    T, din_p = x.shape
    n_heads, hp, _ = w2_all.shape
    tm = min(tm_max, _round_up(T, 8))
    t_pad = _round_up(T, tm)
    if t_pad != T:
        x = jnp.pad(x, ((0, t_pad - T), (0, 0)))

    kernel = functools.partial(_fused_mlp_kernel, hp=hp, n_heads=n_heads)
    return pl.pallas_call(
        kernel,
        out_shape=jax.ShapeDtypeStruct((t_pad, n_heads * hp), x.dtype),
        grid_spec=pltpu.PrefetchScalarGridSpec(
            num_scalar_prefetch=0,
            grid=(t_pad // tm,),
            in_specs=[
                pl.BlockSpec((tm, din_p), lambda i: (i, 0)),
                pl.BlockSpec((din_p, n_heads * hp), lambda i: (0, 0)),   # resident
                pl.BlockSpec((1, n_heads * hp), lambda i: (0, 0)),
                pl.BlockSpec((n_heads, hp, hp), lambda i: (0, 0, 0)),    # resident
                pl.BlockSpec((1, n_heads * hp), lambda i: (0, 0)),
            ],
            out_specs=pl.BlockSpec((tm, n_heads * hp), lambda i: (i, 0)),
        ),
        compiler_params=pltpu.CompilerParams(
            dimension_semantics=("parallel",),
            vmem_limit_bytes=_VMEM_LIMIT),
    )(x, w1_all, b1_all, w2_all, b2_all)


# --------------------------------------------------------------------------
# Kernel 2: Biaffine scorer (bias column written in VMEM, O folded into N)
#   out[b, o, x, y] = sum_ij xd_aug[b,x,i] * W[o,i,j] * xh_aug[b,y,j]
# --------------------------------------------------------------------------
def _biaffine_kernel(xd_ref, w_ref, xh_ref, o_ref, *, hp, o_tile, bias_col):
    col = jax.lax.broadcasted_iota(jnp.int32, xd_ref.shape, 1)      # (S, Hp)
    one = jnp.ones((), xd_ref.dtype)
    xd = jnp.where(col == bias_col, one, xd_ref[...])               # write bias "1" column
    xh = jnp.where(col == bias_col, one, xh_ref[...])
    # Wide first matmul shared across the o_tile out-channels.
    tmp = jnp.dot(xd, w_ref[...], preferred_element_type=jnp.float32)  # (S, o_tile*Hp)
    tmp = tmp.astype(xd_ref.dtype)
    for k in range(o_tile):
        tk = tmp[:, k * hp:(k + 1) * hp]                            # (S, Hp)
        score = jax.lax.dot_general(                                # tk @ xh.T
            tk, xh, (((1,), (1,)), ((), ())),
            preferred_element_type=jnp.float32)                     # (S, S)
        o_ref[0, k] = score.astype(o_ref.dtype)


def biaffine_from_slab(slab, dep_blk, head_blk, w_all, *, seq_len, batch,
                       bias_col, o_tile):
    """slab: (T_pad, 4*Hp) fused-MLP output; w_all: (Hp, O_pad*Hp).

    Reads the dep/head activations straight out of the slab via column-block
    indexing (no HBM split, no ones-concat). Returns (B, O_pad, S, S) f32.
    """
    hp = w_all.shape[0]
    o_pad = w_all.shape[1] // hp
    n_ot = o_pad // o_tile

    kernel = functools.partial(_biaffine_kernel, hp=hp, o_tile=o_tile,
                               bias_col=bias_col)
    return pl.pallas_call(
        kernel,
        out_shape=jax.ShapeDtypeStruct((batch, o_pad, seq_len, seq_len),
                                       jnp.float32),
        grid_spec=pltpu.PrefetchScalarGridSpec(
            num_scalar_prefetch=0,
            grid=(batch, n_ot),
            in_specs=[
                pl.BlockSpec((seq_len, hp), lambda b, ot: (b, dep_blk)),
                pl.BlockSpec((hp, o_tile * hp), lambda b, ot: (0, ot)),
                pl.BlockSpec((seq_len, hp), lambda b, ot: (b, head_blk)),
            ],
            out_specs=pl.BlockSpec((1, o_tile, seq_len, seq_len),
                                   lambda b, ot: (b, ot, 0, 0)),
        ),
        compiler_params=pltpu.CompilerParams(
            dimension_semantics=("parallel", "parallel"),
            vmem_limit_bytes=_VMEM_LIMIT),
    )(slab, w_all, slab)


# --------------------------------------------------------------------------
# Parameter construction (deterministic, synthetic, PyTorch-like layout)
# --------------------------------------------------------------------------
def _xavier_uniform(key, shape):
    receptive = 1
    for s in shape[2:]:
        receptive *= s
    fan_in = shape[1] * receptive
    fan_out = shape[0] * receptive
    a = (6.0 / (fan_in + fan_out)) ** 0.5
    return jax.random.uniform(key, shape, jnp.float32, -a, a)


def _mlp_params(key, d_in, d_hid):
    k1, k2, k3, k4 = jax.random.split(key, 4)
    s1 = 1.0 / (d_in ** 0.5)
    s2 = 1.0 / (d_hid ** 0.5)
    return {
        "w1": jax.random.uniform(k1, (d_in, d_hid), jnp.float32, -s1, s1),
        "b1": jax.random.uniform(k2, (d_hid,), jnp.float32, -s1, s1),
        "w2": jax.random.uniform(k3, (d_hid, d_hid), jnp.float32, -s2, s2),
        "b2": jax.random.uniform(k4, (d_hid,), jnp.float32, -s2, s2),
    }


def init_params(key, *, vocab, d_model, arc_dim, rel_dim, n_rels):
    keys = jax.random.split(key, 7)
    return {
        "embed": jax.random.normal(keys[0], (vocab, d_model), jnp.float32) * 0.02,
        "mlp_arc_dep": _mlp_params(keys[1], d_model, arc_dim),
        "mlp_arc_head": _mlp_params(keys[2], d_model, arc_dim),
        "mlp_rel_dep": _mlp_params(keys[3], d_model, rel_dim),
        "mlp_rel_head": _mlp_params(keys[4], d_model, rel_dim),
        "w_arc": _xavier_uniform(keys[5], (1, arc_dim + 1, arc_dim + 1)),
        "w_rel": _xavier_uniform(keys[6], (n_rels, rel_dim + 1, rel_dim + 1)),
    }


# --------------------------------------------------------------------------
# One-time packing: fuse / pad / cast parameters for the kernels
# --------------------------------------------------------------------------
def _pack_biaffine_weight(w, hp, o_tile):
    """(O, D+1, D+1) f32 -> (Hp, O_pad*Hp) bf16 with real weights top-left."""
    o, d1, _ = w.shape
    o_pad = _round_up(o, o_tile)
    w_p = jnp.zeros((o_pad, hp, hp), jnp.float32).at[:o, :d1, :d1].set(w)
    w_all = jnp.transpose(w_p, (1, 0, 2)).reshape(hp, o_pad * hp)
    return w_all.astype(jnp.bfloat16)


def pack_params(params):
    d_model, arc_dim = params["mlp_arc_dep"]["w1"].shape
    rel_dim = params["mlp_rel_dep"]["w1"].shape[1]
    n_rels = params["w_rel"].shape[0]

    din_p = _round_up(d_model, _LANE)
    # Padded hidden width; >= dim+1 so the biaffine bias column fits in the pad.
    hp = _round_up(max(arc_dim, rel_dim) + 1, _LANE)

    heads = [params["mlp_arc_dep"], params["mlp_arc_head"],
             params["mlp_rel_dep"], params["mlp_rel_head"]]
    w1s, b1s, w2s, b2s = [], [], [], []
    for p in heads:
        din, h = p["w1"].shape
        w1s.append(jnp.zeros((din_p, hp), jnp.float32).at[:din, :h].set(p["w1"]))
        b1s.append(jnp.zeros((hp,), jnp.float32).at[:h].set(p["b1"]))
        w2s.append(jnp.zeros((hp, hp), jnp.float32).at[:h, :h].set(p["w2"]))
        b2s.append(jnp.zeros((hp,), jnp.float32).at[:h].set(p["b2"]))

    return {
        "embed": params["embed"],
        "w1_all": jnp.concatenate(w1s, axis=1).astype(jnp.bfloat16),  # (Din_p, 4*Hp)
        "b1_all": jnp.concatenate(b1s)[None, :],                      # (1, 4*Hp) f32
        "w2_all": jnp.stack(w2s).astype(jnp.bfloat16),                # (4, Hp, Hp)
        "b2_all": jnp.concatenate(b2s)[None, :],                      # (1, 4*Hp) f32
        "w_arc_all": _pack_biaffine_weight(params["w_arc"], hp, _o_tile(1)),
        "w_rel_all": _pack_biaffine_weight(params["w_rel"], hp, _o_tile(n_rels)),
    }


# --------------------------------------------------------------------------
# Forward pass
# --------------------------------------------------------------------------
@functools.partial(jax.jit, static_argnames=("arc_dim", "rel_dim", "n_rels"))
def camembert_for_parsing_forward(packed, input_ids, attention_mask=None, *,
                                  arc_dim, rel_dim, n_rels):
    # TODO(synk): the pretrained Camembert transformer encoder cannot be
    # loaded in-script; stand-in is a deterministic embedding lookup producing
    # enc_out of shape [B, S, d_model] (attention_mask unused by the stand-in).
    enc_out = jnp.take(packed["embed"], input_ids, axis=0)          # (B, S, D) f32
    B, S, D = enc_out.shape
    assert S % 8 == 0, "sequence length must be a multiple of 8 (sublane tile)"

    din_p = packed["w1_all"].shape[0]
    x = enc_out.reshape(B * S, D).astype(jnp.bfloat16)
    if din_p != D:
        x = jnp.pad(x, ((0, 0), (0, din_p - D)))

    # One fused pallas_call for all four MLP heads:
    # slab columns = [arc_dep | arc_head | rel_dep | rel_head], each Hp wide.
    slab = fused_mlp(x, packed["w1_all"], packed["b1_all"],
                     packed["w2_all"], packed["b2_all"])             # (T_pad, 4*Hp)

    arc = biaffine_from_slab(slab, 0, 1, packed["w_arc_all"],
                             seq_len=S, batch=B, bias_col=arc_dim,
                             o_tile=_o_tile(1))                      # (B, 1, S, S)
    rel = biaffine_from_slab(slab, 2, 3, packed["w_rel_all"],
                             seq_len=S, batch=B, bias_col=rel_dim,
                             o_tile=_o_tile(n_rels))                 # (B, O_pad, S, S)

    arc_logits = arc[:, 0]                                           # squeeze(1)
    rel_logits = rel[:, :n_rels]
    # heads/rels not provided in this synthetic setup -> loss = None
    return arc_logits, rel_logits, None


# --------------------------------------------------------------------------
# Pure-JAX reference (same math as the PyTorch module, eval mode) for checking
# --------------------------------------------------------------------------
def reference_forward(params, input_ids):
    enc = jnp.take(params["embed"], input_ids, axis=0)               # (B, S, D) f32

    def mlp(p, x):
        h = jax.nn.gelu(x @ p["w1"] + p["b1"])
        return jax.nn.gelu(h @ p["w2"] + p["b2"])

    def biaff(xd, xh, w):
        ones = jnp.ones(xd.shape[:-1] + (1,), xd.dtype)
        xd = jnp.concatenate([xd, ones], axis=-1)
        xh = jnp.concatenate([xh, ones], axis=-1)
        return jnp.einsum('bxi,oij,byj->boxy', xd, w, xh)

    arc = biaff(mlp(params["mlp_arc_dep"], enc),
                mlp(params["mlp_arc_head"], enc), params["w_arc"])[:, 0]
    rel = biaff(mlp(params["mlp_rel_dep"], enc),
                mlp(params["mlp_rel_head"], enc), params["w_rel"])
    return arc, rel


if __name__ == "__main__":
    B, S = 2, 8
    VOCAB, D_MODEL = 100, 32
    ARC_DIM, REL_DIM, N_RELS = 32, 32, 8

    key = jax.random.PRNGKey(0)
    k_param, k_ids = jax.random.split(key)
    params = init_params(k_param, vocab=VOCAB, d_model=D_MODEL,
                         arc_dim=ARC_DIM, rel_dim=REL_DIM, n_rels=N_RELS)
    packed = pack_params(params)

    input_ids = jax.random.randint(k_ids, (B, S), 0, VOCAB, dtype=jnp.int32)
    attention_mask = jnp.ones((B, S), jnp.int32)

    arc_logits, rel_logits, loss = camembert_for_parsing_forward(
        packed, input_ids, attention_mask,
        arc_dim=ARC_DIM, rel_dim=REL_DIM, n_rels=N_RELS)
    jax.block_until_ready((arc_logits, rel_logits))

    assert arc_logits.shape == (B, S, S)
    assert rel_logits.shape == (B, N_RELS, S, S)
    assert loss is None

    # Correctness check vs. pure-JAX f32 reference (bf16 kernels -> loose tol).
    arc_ref, rel_ref = reference_forward(params, input_ids)
    np.testing.assert_allclose(np.asarray(arc_logits), np.asarray(arc_ref),
                               rtol=1e-1, atol=1e-1)
    np.testing.assert_allclose(np.asarray(rel_logits), np.asarray(rel_ref),
                               rtol=1e-1, atol=1e-1)

    print("KERNEL_OK")
</pallas_src>

<mosaic_0001>
module attributes {stable_mosaic.version = 11 : i64} {
  func.func @_fused_mlp_kernel(%arg0: i32, %arg1: memref<16x128xbf16, #tpu.memory_space<vmem>>, %arg2: memref<128x512xbf16, #tpu.memory_space<vmem>>, %arg3: memref<1x512xf32, #tpu.memory_space<vmem>>, %arg4: memref<4x128x128xbf16, #tpu.memory_space<vmem>>, %arg5: memref<1x512xf32, #tpu.memory_space<vmem>>, %arg6: memref<16x512xbf16, #tpu.memory_space<vmem>>) attributes {dimension_semantics = [#tpu.dimension_semantics<parallel>], iteration_bounds = array<i64: 1>, scalar_prefetch = 0 : i64, scratch_operands = 0 : i64, tpu.core_type = #tpu.core_type<tc>, window_params = [{transform_indices = @transform_0, window_bounds = array<i64: 16, 128>}, {pipeline_mode = #tpu.pipeline_mode<synchronous>, transform_indices = @transform_1, window_bounds = array<i64: 128, 512>}, {pipeline_mode = #tpu.pipeline_mode<synchronous>, transform_indices = @transform_2, window_bounds = array<i64: 1, 512>}, {pipeline_mode = #tpu.pipeline_mode<synchronous>, transform_indices = @transform_3, window_bounds = array<i64: 4, 128, 128>}, {pipeline_mode = #tpu.pipeline_mode<synchronous>, transform_indices = @transform_4, window_bounds = array<i64: 1, 512>}, {transform_indices = @transform_5, window_bounds = array<i64: 16, 512>}]} {
    %c0 = arith.constant 0 : index
    %c0_0 = arith.constant 0 : index
    %0 = vector.load %arg1[%c0, %c0_0] : memref<16x128xbf16, #tpu.memory_space<vmem>>, vector<16x128xbf16>
    %c0_1 = arith.constant 0 : index
    %c0_2 = arith.constant 0 : index
    %1 = vector.load %arg2[%c0_1, %c0_2] : memref<128x512xbf16, #tpu.memory_space<vmem>>, vector<128x512xbf16>
    %cst = arith.constant dense<0.000000e+00> : vector<16x512xf32>
    %2 = tpu.matmul %0, %1, %cst {dimension_numbers = #tpu.dot_dimension_numbers<[1], [0], [0], [1], [0, 0, 1, 1], [], []>} : vector<16x128xbf16>, vector<128x512xbf16>, vector<16x512xf32> -> vector<16x512xf32>
    %c0_3 = arith.constant 0 : index
    %c0_4 = arith.constant 0 : index
    %3 = vector.load %arg3[%c0_3, %c0_4] : memref<1x512xf32, #tpu.memory_space<vmem>>, vector<1x512xf32>
    %4 = vector.broadcast %3 : vector<1x512xf32> to vector<16x512xf32>
    %5 = arith.addf %2, %4 : vector<16x512xf32>
    %6 = arith.mulf %5, %5 : vector<16x512xf32>
    %7 = arith.mulf %5, %6 : vector<16x512xf32>
    %cst_5 = arith.constant 4.471500e-02 : f32
    %8 = vector.broadcast %cst_5 : f32 to vector<16x512xf32>
    %9 = arith.mulf %8, %7 : vector<16x512xf32>
    %10 = arith.addf %5, %9 : vector<16x512xf32>
    %cst_6 = arith.constant 0.797884583 : f32
    %11 = vector.broadcast %cst_6 : f32 to vector<16x512xf32>
    %12 = arith.mulf %11, %10 : vector<16x512xf32>
    %13 = math.tanh %12 : vector<16x512xf32>
    %cst_7 = arith.constant 1.000000e+00 : f32
    %14 = vector.broadcast %cst_7 : f32 to vector<16x512xf32>
    %15 = arith.addf %14, %13 : vector<16x512xf32>
    %cst_8 = arith.constant 5.000000e-01 : f32
    %16 = vector.broadcast %cst_8 : f32 to vector<16x512xf32>
    %17 = arith.mulf %16, %15 : vector<16x512xf32>
    %18 = arith.mulf %5, %17 : vector<16x512xf32>
    %19 = arith.truncf %18 : vector<16x512xf32> to vector<16x512xbf16>
    %20 = vector.extract_strided_slice %19 {offsets = [0, 0], sizes = [16, 128], strides = [1, 1]} : vector<16x512xbf16> to vector<16x128xbf16>
    %c0_9 = arith.constant 0 : index
    %c0_10 = arith.constant 0 : index
    %c0_11 = arith.constant 0 : index
    %21 = vector.load %arg4[%c0_9, %c0_10, %c0_11] : memref<4x128x128xbf16, #tpu.memory_space<vmem>>, vector<1x128x128xbf16>
    %22 = vector.shape_cast %21 : vector<1x128x128xbf16> to vector<128x128xbf16>
    %cst_12 = arith.constant dense<0.000000e+00> : vector<16x128xf32>
    %23 = tpu.matmul %20, %22, %cst_12 {dimension_numbers = #tpu.dot_dimension_numbers<[1], [0], [0], [1], [0, 0, 1, 1], [], []>} : vector<16x128xbf16>, vector<128x128xbf16>, vector<16x128xf32> -> vector<16x128xf32>
    %c0_13 = arith.constant 0 : index
    %c0_14 = arith.constant 0 : index
    %24 = vector.load %arg5[%c0_13, %c0_14] : memref<1x512xf32, #tpu.memory_space<vmem>>, vector<1x128xf32>
    %25 = vector.broadcast %24 : vector<1x128xf32> to vector<16x128xf32>
    %26 = arith.addf %23, %25 : vector<16x128xf32>
    %27 = arith.mulf %26, %26 : vector<16x128xf32>
    %28 = arith.mulf %26, %27 : vector<16x128xf32>
    %cst_15 = arith.constant 4.471500e-02 : f32
    %29 = vector.broadcast %cst_15 : f32 to vector<16x128xf32>
    %30 = arith.mulf %29, %28 : vector<16x128xf32>
    %31 = arith.addf %26, %30 : vector<16x128xf32>
    %cst_16 = arith.constant 0.797884583 : f32
    %32 = vector.broadcast %cst_16 : f32 to vector<16x128xf32>
    %33 = arith.mulf %32, %31 : vector<16x128xf32>
    %34 = math.tanh %33 : vector<16x128xf32>
    %cst_17 = arith.constant 1.000000e+00 : f32
    %35 = vector.broadcast %cst_17 : f32 to vector<16x128xf32>
    %36 = arith.addf %35, %34 : vector<16x128xf32>
    %cst_18 = arith.constant 5.000000e-01 : f32
    %37 = vector.broadcast %cst_18 : f32 to vector<16x128xf32>
    %38 = arith.mulf %37, %36 : vector<16x128xf32>
    %39 = arith.mulf %26, %38 : vector<16x128xf32>
    %40 = arith.truncf %39 : vector<16x128xf32> to vector<16x128xbf16>
    %c0_19 = arith.constant 0 : index
    %c0_20 = arith.constant 0 : index
    %41 = vector.load %arg6[%c0_19, %c0_20] : memref<16x512xbf16, #tpu.memory_space<vmem>>, vector<16x128xbf16>
    tpu.vector_store %arg6[%c0_19, %c0_20], %40 {strides = array<i32>} : memref<16x512xbf16, #tpu.memory_space<vmem>>, vector<16x128xbf16>,
    %42 = vector.extract_strided_slice %19 {offsets = [0, 128], sizes = [16, 128], strides = [1, 1]} : vector<16x512xbf16> to vector<16x128xbf16>
    %c1 = arith.constant 1 : index
    %c0_21 = arith.constant 0 : index
    %c0_22 = arith.constant 0 : index
    %43 = vector.load %arg4[%c1, %c0_21, %c0_22] : memref<4x128x128xbf16, #tpu.memory_space<vmem>>, vector<1x128x128xbf16>
    %44 = vector.shape_cast %43 : vector<1x128x128xbf16> to vector<128x128xbf16>
    %cst_23 = arith.constant dense<0.000000e+00> : vector<16x128xf32>
    %45 = tpu.matmul %42, %44, %cst_23 {dimension_numbers = #tpu.dot_dimension_numbers<[1], [0], [0], [1], [0, 0, 1, 1], [], []>} : vector<16x128xbf16>, vector<128x128xbf16>, vector<16x128xf32> -> vector<16x128xf32>
    %c0_24 = arith.constant 0 : index
    %c128 = arith.constant 128 : index
    %46 = vector.load %arg5[%c0_24, %c128] : memref<1x512xf32, #tpu.memory_space<vmem>>, vector<1x128xf32>
    %47 = vector.broadcast %46 : vector<1x128xf32> to vector<16x128xf32>
    %48 = arith.addf %45, %47 : vector<16x128xf32>
    %49 = arith.mulf %48, %48 : vector<16x128xf32>
    %50 = arith.mulf %48, %49 : vector<16x128xf32>
    %cst_25 = arith.constant 4.471500e-02 : f32
    %51 = vector.broadcast %cst_25 : f32 to vector<16x128xf32>
    %52 = arith.mulf %51, %50 : vector<16x128xf32>
    %53 = arith.addf %48, %52 : vector<16x128xf32>
    %cst_26 = arith.constant 0.797884583 : f32
    %54 = vector.broadcast %cst_26 : f32 to vector<16x128xf32>
    %55 = arith.mulf %54, %53 : vector<16x128xf32>
    %56 = math.tanh %55 : vector<16x128xf32>
    %cst_27 = arith.constant 1.000000e+00 : f32
    %57 = vector.broadcast %cst_27 : f32 to vector<16x128xf32>
    %58 = arith.addf %57, %56 : vector<16x128xf32>
    %cst_28 = arith.constant 5.000000e-01 : f32
    %59 = vector.broadcast %cst_28 : f32 to vector<16x128xf32>
    %60 = arith.mulf %59, %58 : vector<16x128xf32>
    %61 = arith.mulf %48, %60 : vector<16x128xf32>
    %62 = arith.truncf %61 : vector<16x128xf32> to vector<16x128xbf16>
    %c0_29 = arith.constant 0 : index
    %c128_30 = arith.constant 128 : index
    %63 = vector.load %arg6[%c0_29, %c128_30] : memref<16x512xbf16, #tpu.memory_space<vmem>>, vector<16x128xbf16>
    tpu.vector_store %arg6[%c0_29, %c128_30], %62 {strides = array<i32>} : memref<16x512xbf16, #tpu.memory_space<vmem>>, vector<16x128xbf16>,
    %64 = vector.extract_strided_slice %19 {offsets = [0, 256], sizes = [16, 128], strides = [1, 1]} : vector<16x512xbf16> to vector<16x128xbf16>
    %c2 = arith.constant 2 : index
    %c0_31 = arith.constant 0 : index
    %c0_32 = arith.constant 0 : index
    %65 = vector.load %arg4[%c2, %c0_31, %c0_32] : memref<4x128x128xbf16, #tpu.memory_space<vmem>>, vector<1x128x128xbf16>
    %66 = vector.shape_cast %65 : vector<1x128x128xbf16> to vector<128x128xbf16>
    %cst_33 = arith.constant dense<0.000000e+00> : vector<16x128xf32>
    %67 = tpu.matmul %64, %66, %cst_33 {dimension_numbers = #tpu.dot_dimension_numbers<[1], [0], [0], [1], [0, 0, 1, 1], [], []>} : vector<16x128xbf16>, vector<128x128xbf16>, vector<16x128xf32> -> vector<16x128xf32>
    %c0_34 = arith.constant 0 : index
    %c256 = arith.constant 256 : index
    %68 = vector.load %arg5[%c0_34, %c256] : memref<1x512xf32, #tpu.memory_space<vmem>>, vector<1x128xf32>
    %69 = vector.broadcast %68 : vector<1x128xf32> to vector<16x128xf32>
    %70 = arith.addf %67, %69 : vector<16x128xf32>
    %71 = arith.mulf %70, %70 : vector<16x128xf32>
    %72 = arith.mulf %70, %71 : vector<16x128xf32>
    %cst_35 = arith.constant 4.471500e-02 : f32
    %73 = vector.broadcast %cst_35 : f32 to vector<16x128xf32>
    %74 = arith.mulf %73, %72 : vector<16x128xf32>
    %75 = arith.addf %70, %74 : vector<16x128xf32>
    %cst_36 = arith.constant 0.797884583 : f32
    %76 = vector.broadcast %cst_36 : f32 to vector<16x128xf32>
    %77 = arith.mulf %76, %75 : vector<16x128xf32>
    %78 = math.tanh %77 : vector<16x128xf32>
    %cst_37 = arith.constant 1.000000e+00 : f32
    %79 = vector.broadcast %cst_37 : f32 to vector<16x128xf32>
    %80 = arith.addf %79, %78 : vector<16x128xf32>
    %cst_38 = arith.constant 5.000000e-01 : f32
    %81 = vector.broadcast %cst_38 : f32 to vector<16x128xf32>
    %82 = arith.mulf %81, %80 : vector<16x128xf32>
    %83 = arith.mulf %70, %82 : vector<16x128xf32>
    %84 = arith.truncf %83 : vector<16x128xf32> to vector<16x128xbf16>
    %c0_39 = arith.constant 0 : index
    %c256_40 = arith.constant 256 : index
    %85 = vector.load %arg6[%c0_39, %c256_40] : memref<16x512xbf16, #tpu.memory_space<vmem>>, vector<16x128xbf16>
    tpu.vector_store %arg6[%c0_39, %c256_40], %84 {strides = array<i32>} : memref<16x512xbf16, #tpu.memory_space<vmem>>, vector<16x128xbf16>,
    %86 = vector.extract_strided_slice %19 {offsets = [0, 384], sizes = [16, 128], strides = [1, 1]} : vector<16x512xbf16> to vector<16x128xbf16>
    %c3 = arith.constant 3 : index
    %c0_41 = arith.constant 0 : index
    %c0_42 = arith.constant 0 : index
    %87 = vector.load %arg4[%c3, %c0_41, %c0_42] : memref<4x128x128xbf16, #tpu.memory_space<vmem>>, vector<1x128x128xbf16>
    %88 = vector.shape_cast %87 : vector<1x128x128xbf16> to vector<128x128xbf16>
    %cst_43 = arith.constant dense<0.000000e+00> : vector<16x128xf32>
    %89 = tpu.matmul %86, %88, %cst_43 {dimension_numbers = #tpu.dot_dimension_numbers<[1], [0], [0], [1], [0, 0, 1, 1], [], []>} : vector<16x128xbf16>, vector<128x128xbf16>, vector<16x128xf32> -> vector<16x128xf32>
    %c0_44 = arith.constant 0 : index
    %c384 = arith.constant 384 : index
    %90 = vector.load %arg5[%c0_44, %c384] : memref<1x512xf32, #tpu.memory_space<vmem>>, vector<1x128xf32>
    %91 = vector.broadcast %90 : vector<1x128xf32> to vector<16x128xf32>
    %92 = arith.addf %89, %91 : vector<16x128xf32>
    %93 = arith.mulf %92, %92 : vector<16x128xf32>
    %94 = arith.mulf %92, %93 : vector<16x128xf32>
    %cst_45 = arith.constant 4.471500e-02 : f32
    %95 = vector.broadcast %cst_45 : f32 to vector<16x128xf32>
    %96 = arith.mulf %95, %94 : vector<16x128xf32>
    %97 = arith.addf %92, %96 : vector<16x128xf32>
    %cst_46 = arith.constant 0.797884583 : f32
    %98 = vector.broadcast %cst_46 : f32 to vector<16x128xf32>
    %99 = arith.mulf %98, %97 : vector<16x128xf32>
    %100 = math.tanh %99 : vector<16x128xf32>
    %cst_47 = arith.constant 1.000000e+00 : f32
    %101 = vector.broadcast %cst_47 : f32 to vector<16x128xf32>
    %102 = arith.addf %101, %100 : vector<16x128xf32>
    %cst_48 = arith.constant 5.000000e-01 : f32
    %103 = vector.broadcast %cst_48 : f32 to vector<16x128xf32>
    %104 = arith.mulf %103, %102 : vector<16x128xf32>
    %105 = arith.mulf %92, %104 : vector<16x128xf32>
    %106 = arith.truncf %105 : vector<16x128xf32> to vector<16x128xbf16>
    %c0_49 = arith.constant 0 : index
    %c384_50 = arith.constant 384 : index
    %107 = vector.load %arg6[%c0_49, %c384_50] : memref<16x512xbf16, #tpu.memory_space<vmem>>, vector<16x128xbf16>
    tpu.vector_store %arg6[%c0_49, %c384_50], %106 {strides = array<i32>} : memref<16x512xbf16, #tpu.memory_space<vmem>>, vector<16x128xbf16>,
    return
  }
  func.func @transform_0(%arg0: i32) -> (i32, i32) {
    %c0_i32 = arith.constant 0 : i32
    %c0_i32_0 = arith.constant 0 : i32
    return %arg0, %c0_i32 : i32, i32
  }
  func.func @transform_1(%arg0: i32) -> (i32, i32) {
    %c0_i32 = arith.constant 0 : i32
    %c0_i32_0 = arith.constant 0 : i32
    %c0_i32_1 = arith.constant 0 : i32
    return %c0_i32, %c0_i32_0 : i32, i32
  }
  func.func @transform_2(%arg0: i32) -> (i32, i32) {
    %c0_i32 = arith.constant 0 : i32
    %c0_i32_0 = arith.constant 0 : i32
    %c0_i32_1 = arith.constant 0 : i32
    return %c0_i32, %c0_i32_0 : i32, i32
  }
  func.func @transform_3(%arg0: i32) -> (i32, i32, i32) {
    %c0_i32 = arith.constant 0 : i32
    %c0_i32_0 = arith.constant 0 : i32
    %c0_i32_1 = arith.constant 0 : i32
    %c0_i32_2 = arith.constant 0 : i32
    return %c0_i32, %c0_i32_0, %c0_i32_1 : i32, i32, i32
  }
  func.func @transform_4(%arg0: i32) -> (i32, i32) {
    %c0_i32 = arith.constant 0 : i32
    %c0_i32_0 = arith.constant 0 : i32
    %c0_i32_1 = arith.constant 0 : i32
    return %c0_i32, %c0_i32_0 : i32, i32
  }
  func.func @transform_5(%arg0: i32) -> (i32, i32) {
    %c0_i32 = arith.constant 0 : i32
    %c0_i32_0 = arith.constant 0 : i32
    return %arg0, %c0_i32 : i32, i32
  }
}

module attributes {stable_mosaic.version = 11 : i64} {
  func.func @_biaffine_kernel(%arg0: i32, %arg1: i32, %arg2: memref<8x128xbf16, #tpu.memory_space<vmem>>, %arg3: memref<128x128xbf16, #tpu.memory_space<vmem>>, %arg4: memref<8x128xbf16, #tpu.memory_space<vmem>>, %arg5: memref<1x1x8x8xf32, #tpu.memory_space<vmem>>) attributes {dimension_semantics = [#tpu.dimension_semantics<parallel>, #tpu.dimension_semantics<parallel>], iteration_bounds = array<i64: 2, 1>, scalar_prefetch = 0 : i64, scratch_operands = 0 : i64, tpu.core_type = #tpu.core_type<tc>, window_params = [{transform_indices = @transform_0, window_bounds = array<i64: 8, 128>}, {transform_indices = @transform_1, window_bounds = array<i64: 128, 128>}, {transform_indices = @transform_2, window_bounds = array<i64: 8, 128>}, {transform_indices = @transform_3, window_bounds = array<i64: 1, 1, 8, 8>}]} {
    %0 = tpu.iota {dimensions = array<i32: 1>} : vector<8x128xi32>
    %c32_i32 = arith.constant 32 : i32
    %1 = vector.broadcast %c32_i32 : i32 to vector<8x128xi32>
    %2 = arith.cmpi eq, %0, %1 : vector<8x128xi32>
    %c0 = arith.constant 0 : index
    %c0_0 = arith.constant 0 : index
    %3 = vector.load %arg2[%c0, %c0_0] : memref<8x128xbf16, #tpu.memory_space<vmem>>, vector<8x128xbf16>
    %cst = arith.constant 1.000000e+00 : bf16
    %4 = vector.broadcast %cst : bf16 to vector<8x128xbf16>
    %5 = arith.select %2, %4, %3 : vector<8x128xi1>, vector<8x128xbf16>
    %c32_i32_1 = arith.constant 32 : i32
    %6 = vector.broadcast %c32_i32_1 : i32 to vector<8x128xi32>
    %7 = arith.cmpi eq, %0, %6 : vector<8x128xi32>
    %c0_2 = arith.constant 0 : index
    %c0_3 = arith.constant 0 : index
    %8 = vector.load %arg4[%c0_2, %c0_3] : memref<8x128xbf16, #tpu.memory_space<vmem>>, vector<8x128xbf16>
    %cst_4 = arith.constant 1.000000e+00 : bf16
    %9 = vector.broadcast %cst_4 : bf16 to vector<8x128xbf16>
    %10 = arith.select %7, %9, %8 : vector<8x128xi1>, vector<8x128xbf16>
    %c0_5 = arith.constant 0 : index
    %c0_6 = arith.constant 0 : index
    %11 = vector.load %arg3[%c0_5, %c0_6] : memref<128x128xbf16, #tpu.memory_space<vmem>>, vector<128x128xbf16>
    %cst_7 = arith.constant dense<0.000000e+00> : vector<8x128xf32>
    %12 = tpu.matmul %5, %11, %cst_7 {dimension_numbers = #tpu.dot_dimension_numbers<[1], [0], [0], [1], [0, 0, 1, 1], [], []>} : vector<8x128xbf16>, vector<128x128xbf16>, vector<8x128xf32> -> vector<8x128xf32>
    %13 = arith.truncf %12 : vector<8x128xf32> to vector<8x128xbf16>
    %cst_8 = arith.constant dense<0.000000e+00> : vector<8x8xf32>
    %14 = tpu.matmul %13, %10, %cst_8 {dimension_numbers = #tpu.dot_dimension_numbers<[1], [1], [0], [0], [0, 0, 1, 0], [], []>} : vector<8x128xbf16>, vector<8x128xbf16>, vector<8x8xf32> -> vector<8x8xf32>
    %c0_9 = arith.constant 0 : index
    %c0_10 = arith.constant 0 : index
    %c0_11 = arith.constant 0 : index
    %c0_12 = arith.constant 0 : index
    %15 = vector.load %arg5[%c0_9, %c0_10, %c0_11, %c0_12] : memref<1x1x8x8xf32, #tpu.memory_space<vmem>>, vector<1x1x8x8xf32>
    %16 = vector.shape_cast %15 : vector<1x1x8x8xf32> to vector<8x8xf32>
    %17 = vector.shape_cast %14 : vector<8x8xf32> to vector<1x1x8x8xf32>
    tpu.vector_store %arg5[%c0_9, %c0_10, %c0_11, %c0_12], %17 {strides = array<i32>} : memref<1x1x8x8xf32, #tpu.memory_space<vmem>>, vector<1x1x8x8xf32>,
    return
  }
  func.func @transform_0(%arg0: i32, %arg1: i32) -> (i32, i32) {
    %c0_i32 = arith.constant 0 : i32
    %c0_i32_0 = arith.constant 0 : i32
    return %arg0, %c0_i32 : i32, i32
  }
  func.func @transform_1(%arg0: i32, %arg1: i32) -> (i32, i32) {
    %c0_i32 = arith.constant 0 : i32
    %c0_i32_0 = arith.constant 0 : i32
    return %c0_i32, %arg1 : i32, i32
  }
  func.func @transform_2(%arg0: i32, %arg1: i32) -> (i32, i32) {
    %c1_i32 = arith.constant 1 : i32
    %c0_i32 = arith.constant 0 : i32
    return %arg0, %c1_i32 : i32, i32
  }
  func.func @transform_3(%arg0: i32, %arg1: i32) -> (i32, i32, i32, i32) {
    %c0_i32 = arith.constant 0 : i32
    %c0_i32_0 = arith.constant 0 : i32
    %c0_i32_1 = arith.constant 0 : i32
    return %arg0, %arg1, %c0_i32, %c0_i32_0 : i32, i32, i32, i32
  }
}

module attributes {stable_mosaic.version = 11 : i64} {
  func.func @_biaffine_kernel(%arg0: i32, %arg1: i32, %arg2: memref<8x128xbf16, #tpu.memory_space<vmem>>, %arg3: memref<128x1024xbf16, #tpu.memory_space<vmem>>, %arg4: memref<8x128xbf16, #tpu.memory_space<vmem>>, %arg5: memref<1x8x8x8xf32, #tpu.memory_space<vmem>>) attributes {dimension_semantics = [#tpu.dimension_semantics<parallel>, #tpu.dimension_semantics<parallel>], iteration_bounds = array<i64: 2, 1>, scalar_prefetch = 0 : i64, scratch_operands = 0 : i64, tpu.core_type = #tpu.core_type<tc>, window_params = [{transform_indices = @transform_0, window_bounds = array<i64: 8, 128>}, {transform_indices = @transform_1, window_bounds = array<i64: 128, 1024>}, {transform_indices = @transform_2, window_bounds = array<i64: 8, 128>}, {transform_indices = @transform_3, window_bounds = array<i64: 1, 8, 8, 8>}]} {
    %0 = tpu.iota {dimensions = array<i32: 1>} : vector<8x128xi32>
    %c32_i32 = arith.constant 32 : i32
    %1 = vector.broadcast %c32_i32 : i32 to vector<8x128xi32>
    %2 = arith.cmpi eq, %0, %1 : vector<8x128xi32>
    %c0 = arith.constant 0 : index
    %c0_0 = arith.constant 0 : index
    %3 = vector.load %arg2[%c0, %c0_0] : memref<8x128xbf16, #tpu.memory_space<vmem>>, vector<8x128xbf16>
    %cst = arith.constant 1.000000e+00 : bf16
    %4 = vector.broadcast %cst : bf16 to vector<8x128xbf16>
    %5 = arith.select %2, %4, %3 : vector<8x128xi1>, vector<8x128xbf16>
    %c32_i32_1 = arith.constant 32 : i32
    %6 = vector.broadcast %c32_i32_1 : i32 to vector<8x128xi32>
    %7 = arith.cmpi eq, %0, %6 : vector<8x128xi32>
    %c0_2 = arith.constant 0 : index
    %c0_3 = arith.constant 0 : index
    %8 = vector.load %arg4[%c0_2, %c0_3] : memref<8x128xbf16, #tpu.memory_space<vmem>>, vector<8x128xbf16>
    %cst_4 = arith.constant 1.000000e+00 : bf16
    %9 = vector.broadcast %cst_4 : bf16 to vector<8x128xbf16>
    %10 = arith.select %7, %9, %8 : vector<8x128xi1>, vector<8x128xbf16>
    %c0_5 = arith.constant 0 : index
    %c0_6 = arith.constant 0 : index
    %11 = vector.load %arg3[%c0_5, %c0_6] : memref<128x1024xbf16, #tpu.memory_space<vmem>>, vector<128x1024xbf16>
    %cst_7 = arith.constant dense<0.000000e+00> : vector<8x1024xf32>
    %12 = tpu.matmul %5, %11, %cst_7 {dimension_numbers = #tpu.dot_dimension_numbers<[1], [0], [0], [1], [0, 0, 1, 1], [], []>} : vector<8x128xbf16>, vector<128x1024xbf16>, vector<8x1024xf32> -> vector<8x1024xf32>
    %13 = arith.truncf %12 : vector<8x1024xf32> to vector<8x1024xbf16>
    %14 = vector.extract_strided_slice %13 {offsets = [0, 0], sizes = [8, 128], strides = [1, 1]} : vector<8x1024xbf16> to vector<8x128xbf16>
    %cst_8 = arith.constant dense<0.000000e+00> : vector<8x8xf32>
    %15 = tpu.matmul %14, %10, %cst_8 {dimension_numbers = #tpu.dot_dimension_numbers<[1], [1], [0], [0], [0, 0, 1, 0], [], []>} : vector<8x128xbf16>, vector<8x128xbf16>, vector<8x8xf32> -> vector<8x8xf32>
    %c0_9 = arith.constant 0 : index
    %c0_10 = arith.constant 0 : index
    %c0_11 = arith.constant 0 : index
    %c0_12 = arith.constant 0 : index
    %16 = vector.load %arg5[%c0_9, %c0_10, %c0_11, %c0_12] : memref<1x8x8x8xf32, #tpu.memory_space<vmem>>, vector<1x1x8x8xf32>
    %17 = vector.shape_cast %16 : vector<1x1x8x8xf32> to vector<8x8xf32>
    %18 = vector.shape_cast %15 : vector<8x8xf32> to vector<1x1x8x8xf32>
    tpu.vector_store %arg5[%c0_9, %c0_10, %c0_11, %c0_12], %18 {strides = array<i32>} : memref<1x8x8x8xf32, #tpu.memory_space<vmem>>, vector<1x1x8x8xf32>,
    %19 = vector.extract_strided_slice %13 {offsets = [0, 128], sizes = [8, 128], strides = [1, 1]} : vector<8x1024xbf16> to vector<8x128xbf16>
    %cst_13 = arith.constant dense<0.000000e+00> : vector<8x8xf32>
    %20 = tpu.matmul %19, %10, %cst_13 {dimension_numbers = #tpu.dot_dimension_numbers<[1], [1], [0], [0], [0, 0, 1, 0], [], []>} : vector<8x128xbf16>, vector<8x128xbf16>, vector<8x8xf32> -> vector<8x8xf32>
    %c0_14 = arith.constant 0 : index
    %c1 = arith.constant 1 : index
    %c0_15 = arith.constant 0 : index
    %c0_16 = arith.constant 0 : index
    %21 = vector.load %arg5[%c0_14, %c1, %c0_15, %c0_16] : memref<1x8x8x8xf32, #tpu.memory_space<vmem>>, vector<1x1x8x8xf32>
    %22 = vector.shape_cast %21 : vector<1x1x8x8xf32> to vector<8x8xf32>
    %23 = vector.shape_cast %20 : vector<8x8xf32> to vector<1x1x8x8xf32>
    tpu.vector_store %arg5[%c0_14, %c1, %c0_15, %c0_16], %23 {strides = array<i32>} : memref<1x8x8x8xf32, #tpu.memory_space<vmem>>, vector<1x1x8x8xf32>,
    %24 = vector.extract_strided_slice %13 {offsets = [0, 256], sizes = [8, 128], strides = [1, 1]} : vector<8x1024xbf16> to vector<8x128xbf16>
    %cst_17 = arith.constant dense<0.000000e+00> : vector<8x8xf32>
    %25 = tpu.matmul %24, %10, %cst_17 {dimension_numbers = #tpu.dot_dimension_numbers<[1], [1], [0], [0], [0, 0, 1, 0], [], []>} : vector<8x128xbf16>, vector<8x128xbf16>, vector<8x8xf32> -> vector<8x8xf32>
    %c0_18 = arith.constant 0 : index
    %c2 = arith.constant 2 : index
    %c0_19 = arith.constant 0 : index
    %c0_20 = arith.constant 0 : index
    %26 = vector.load %arg5[%c0_18, %c2, %c0_19, %c0_20] : memref<1x8x8x8xf32, #tpu.memory_space<vmem>>, vector<1x1x8x8xf32>
    %27 = vector.shape_cast %26 : vector<1x1x8x8xf32> to vector<8x8xf32>
    %28 = vector.shape_cast %25 : vector<8x8xf32> to vector<1x1x8x8xf32>
    tpu.vector_store %arg5[%c0_18, %c2, %c0_19, %c0_20], %28 {strides = array<i32>} : memref<1x8x8x8xf32, #tpu.memory_space<vmem>>, vector<1x1x8x8xf32>,
    %29 = vector.extract_strided_slice %13 {offsets = [0, 384], sizes = [8, 128], strides = [1, 1]} : vector<8x1024xbf16> to vector<8x128xbf16>
    %cst_21 = arith.constant dense<0.000000e+00> : vector<8x8xf32>
    %30 = tpu.matmul %29, %10, %cst_21 {dimension_numbers = #tpu.dot_dimension_numbers<[1], [1], [0], [0], [0, 0, 1, 0], [], []>} : vector<8x128xbf16>, vector<8x128xbf16>, vector<8x8xf32> -> vector<8x8xf32>
    %c0_22 = arith.constant 0 : index
    %c3 = arith.constant 3 : index
    %c0_23 = arith.constant 0 : index
    %c0_24 = arith.constant 0 : index
    %31 = vector.load %arg5[%c0_22, %c3, %c0_23, %c0_24] : memref<1x8x8x8xf32, #tpu.memory_space<vmem>>, vector<1x1x8x8xf32>
    %32 = vector.shape_cast %31 : vector<1x1x8x8xf32> to vector<8x8xf32>
    %33 = vector.shape_cast %30 : vector<8x8xf32> to vector<1x1x8x8xf32>
    tpu.vector_store %arg5[%c0_22, %c3, %c0_23, %c0_24], %33 {strides = array<i32>} : memref<1x8x8x8xf32, #tpu.memory_space<vmem>>, vector<1x1x8x8xf32>,
    %34 = vector.extract_strided_slice %13 {offsets = [0, 512], sizes = [8, 128], strides = [1, 1]} : vector<8x1024xbf16> to vector<8x128xbf16>
    %cst_25 = arith.constant dense<0.000000e+00> : vector<8x8xf32>
    %35 = tpu.matmul %34, %10, %cst_25 {dimension_numbers = #tpu.dot_dimension_numbers<[1], [1], [0], [0], [0, 0, 1, 0], [], []>} : vector<8x128xbf16>, vector<8x128xbf16>, vector<8x8xf32> -> vector<8x8xf32>
    %c0_26 = arith.constant 0 : index
    %c4 = arith.constant 4 : index
    %c0_27 = arith.constant 0 : index
    %c0_28 = arith.constant 0 : index
    %36 = vector.load %arg5[%c0_26, %c4, %c0_27, %c0_28] : memref<1x8x8x8xf32, #tpu.memory_space<vmem>>, vector<1x1x8x8xf32>
    %37 = vector.shape_cast %36 : vector<1x1x8x8xf32> to vector<8x8xf32>
    %38 = vector.shape_cast %35 : vector<8x8xf32> to vector<1x1x8x8xf32>
    tpu.vector_store %arg5[%c0_26, %c4, %c0_27, %c0_28], %38 {strides = array<i32>} : memref<1x8x8x8xf32, #tpu.memory_space<vmem>>, vector<1x1x8x8xf32>,
    %39 = vector.extract_strided_slice %13 {offsets = [0, 640], sizes = [8, 128], strides = [1, 1]} : vector<8x1024xbf16> to vector<8x128xbf16>
    %cst_29 = arith.constant dense<0.000000e+00> : vector<8x8xf32>
    %40 = tpu.matmul %39, %10, %cst_29 {dimension_numbers = #tpu.dot_dimension_numbers<[1], [1], [0], [0], [0, 0, 1, 0], [], []>} : vector<8x128xbf16>, vector<8x128xbf16>, vector<8x8xf32> -> vector<8x8xf32>
    %c0_30 = arith.constant 0 : index
    %c5 = arith.constant 5 : index
    %c0_31 = arith.constant 0 : index
    %c0_32 = arith.constant 0 : index
    %41 = vector.load %arg5[%c0_30, %c5, %c0_31, %c0_32] : memref<1x8x8x8xf32, #tpu.memory_space<vmem>>, vector<1x1x8x8xf32>
    %42 = vector.shape_cast %41 : vector<1x1x8x8xf32> to vector<8x8xf32>
    %43 = vector.shape_cast %40 : vector<8x8xf32> to vector<1x1x8x8xf32>
    tpu.vector_store %arg5[%c0_30, %c5, %c0_31, %c0_32], %43 {strides = array<i32>} : memref<1x8x8x8xf32, #tpu.memory_space<vmem>>, vector<1x1x8x8xf32>,
    %44 = vector.extract_strided_slice %13 {offsets = [0, 768], sizes = [8, 128], strides = [1, 1]} : vector<8x1024xbf16> to vector<8x128xbf16>
    %cst_33 = arith.constant dense<0.000000e+00> : vector<8x8xf32>
    %45 = tpu.matmul %44, %10, %cst_33 {dimension_numbers = #tpu.dot_dimension_numbers<[1], [1], [0], [0], [0, 0, 1, 0], [], []>} : vector<8x128xbf16>, vector<8x128xbf16>, vector<8x8xf32> -> vector<8x8xf32>
    %c0_34 = arith.constant 0 : index
    %c6 = arith.constant 6 : index
    %c0_35 = arith.constant 0 : index
    %c0_36 = arith.constant 0 : index
    %46 = vector.load %arg5[%c0_34, %c6, %c0_35, %c0_36] : memref<1x8x8x8xf32, #tpu.memory_space<vmem>>, vector<1x1x8x8xf32>
    %47 = vector.shape_cast %46 : vector<1x1x8x8xf32> to vector<8x8xf32>
    %48 = vector.shape_cast %45 : vector<8x8xf32> to vector<1x1x8x8xf32>
    tpu.vector_store %arg5[%c0_34, %c6, %c0_35, %c0_36], %48 {strides = array<i32>} : memref<1x8x8x8xf32, #tpu.memory_space<vmem>>, vector<1x1x8x8xf32>,
    %49 = vector.extract_strided_slice %13 {offsets = [0, 896], sizes = [8, 128], strides = [1, 1]} : vector<8x1024xbf16> to vector<8x128xbf16>
    %cst_37 = arith.constant dense<0.000000e+00> : vector<8x8xf32>
    %50 = tpu.matmul %49, %10, %cst_37 {dimension_numbers = #tpu.dot_dimension_numbers<[1], [1], [0], [0], [0, 0, 1, 0], [], []>} : vector<8x128xbf16>, vector<8x128xbf16>, vector<8x8xf32> -> vector<8x8xf32>
    %c0_38 = arith.constant 0 : index
    %c7 = arith.constant 7 : index
    %c0_39 = arith.constant 0 : index
    %c0_40 = arith.constant 0 : index
    %51 = vector.load %arg5[%c0_38, %c7, %c0_39, %c0_40] : memref<1x8x8x8xf32, #tpu.memory_space<vmem>>, vector<1x1x8x8xf32>
    %52 = vector.shape_cast %51 : vector<1x1x8x8xf32> to vector<8x8xf32>
    %53 = vector.shape_cast %50 : vector<8x8xf32> to vector<1x1x8x8xf32>
    tpu.vector_store %arg5[%c0_38, %c7, %c0_39, %c0_40], %53 {strides = array<i32>} : memref<1x8x8x8xf32, #tpu.memory_space<vmem>>, vector<1x1x8x8xf32>,
    return
  }
  func.func @transform_0(%arg0: i32, %arg1: i32) -> (i32, i32) {
    %c2_i32 = arith.constant 2 : i32
    %c0_i32 = arith.constant 0 : i32
    return %arg0, %c2_i32 : i32, i32
  }
  func.func @transform_1(%arg0: i32, %arg1: i32) -> (i32, i32) {
    %c0_i32 = arith.constant 0 : i32
    %c0_i32_0 = arith.constant 0 : i32
    return %c0_i32, %arg1 : i32, i32
  }
  func.func @transform_2(%arg0: i32, %arg1: i32) -> (i32, i32) {
    %c3_i32 = arith.constant 3 : i32
    %c0_i32 = arith.constant 0 : i32
    return %arg0, %c3_i32 : i32, i32
  }
  func.func @transform_3(%arg0: i32, %arg1: i32) -> (i32, i32, i32, i32) {
    %c0_i32 = arith.constant 0 : i32
    %c0_i32_0 = arith.constant 0 : i32
    %c0_i32_1 = arith.constant 0 : i32
    return %arg0, %arg1, %c0_i32, %c0_i32_0 : i32, i32, i32, i32
  }
}

</mosaic_0001>

<llo_original>
// kernel: camembert_for_parsing_forward.4
$region0: #{camembert_for_parsing_forward.4}
  #allocation0 [shape = 'u32[]', space=smem, size = 0x4, offset = 0x4, fixed_abs, tag = 'smem constant byte address 0x4 - core index']
  #allocation1 [shape = 'u32[144,128]{1,0:T(1,128)}', space=vmem, size = 0x12000, scoped, tag = 'internal scratch']
  %s0 = inlined_call_operand.vmem [shape: bf16[16,512], index: 0, kind: input, shape index: {}, may-alias: {0,2}]
  %s1 = inlined_call_operand.vmem [shape: bf16[128,128], index: 1, kind: input, shape index: {}]
  %s2 = inlined_call_operand.vmem [shape: bf16[16,512], index: 2, kind: input, shape index: {}, may-alias: {0,2}]
  %s3 = inlined_call_operand.hbm [shape: f32[2,1,8,8], index: 3, kind: output, shape index: {}]
  %s4 = sld [smem:[#allocation0]]
  $region45: #{camembert_for_parsing_forward.4} parent=0
    _
  %s6 = ssub.s32 1, %s4
  %s7 = scalar_select 0, %s6, %s4
  $region1: #{camembert_for_parsing_forward.4} parent=0
    #allocation2 [shape = 'u8[8192]{0}', space=vmem, size = 0x2000, scoped, tag = 'output window, operand 0']
    #allocation3 [shape = 's32[2]{0}', space=sflag, size = 0x8, scoped, tag = 'scoped memory for camembert_for_parsing_forward.4']
    %8 = vsyncpa [#allocation3], 0
    %s9 = scalar_lea.sflag [#allocation3], 1
    %10 = vsyncpa %s9, 0
    loop: start=0, step=1, limit=4
    $region2: #{camembert_for_parsing_forward.4} parent=1 // loop_pre_header
      _
    $region3: #{camembert_for_parsing_forward.4} parent=1 // loop_header
      %s12 = sphi 0, %s16
      %p13 = scmp.ge.s32.totalorder %s12, 4
      %s19 = sphi 0, %s31
      %s20 = sphi 0, %s27
      %s21 = sphi 0, %s19
      %s22 = sphi 0, %s20
      %s23 = sphi 0, %s21
      %s24 = sphi 0, %s22
      %s34 = sphi 0, %s36
      %s37 = sphi 0, %s34
      %s38 = sphi 0, %s37
      %s54 = sphi 0, %s38
      %s60 = sphi 0, %s62
      %s63 = sphi 0, %s60
      %s64 = sphi 0, %s63
      %s80 = sphi 0, %s64
      %s86 = sphi 0, %s88
      %s89 = sphi 0, %s86
      %s90 = sphi 0, %s89
      %s106 = sphi 0, %s90
      %s114 = sphi 0, %s116
      %s117 = sphi 0, %s114
      %s118 = sphi 0, %s117
      %s134 = sphi 0, %s118
    $region4: #{camembert_for_parsing_forward.4} parent=1 // loop_header_branch
      %15 = sbr.rel (%p13) target = $region8
    $region5: #{camembert_for_parsing_forward.4} parent=1 // loop_body
      %s17 = ssub.s32 %s12, 1
      %s18 = ssub.s32 %s12, 2
      %s25 = sadd.s32 1, %s20
      %p26 = scmp.ge.s32.totalorder %s25, 1
      %s27 = scalar_select %p26, 0, %s25
      %s28 = sadd.s32 1, %s19
      %s29 = scalar_select %p26, %s28, %s19
      %p30 = scmp.ge.s32.totalorder %s29, 2
      %s31 = scalar_select %p30, 0, %s29
      %s32 = ssub.s32 %s19, %s31
      %p33 = scmp.eq.s32.totalorder %s32, 0
      %s35 = sadd.s32 %s34, 1
      %s36 = scalar_select %p33, %s34, %s35
      %p39 = pneg %p33
      %p40 = scmp.eq.s32.totalorder %s12, 1
      %p41 = por %p39, %p40
      %p42 = scmp.ne.s32.totalorder %s34, %s37
      %p43 = scmp.eq.s32.totalorder %s12, 0
      %p44 = por %p42, %p43
      %p45 = scmp.ne.s32.totalorder %s34, %s37
      %p46 = scmp.eq.s32.totalorder %s17, 1
      %p47 = por %p45, %p46
      %p48 = scmp.ne.s32.totalorder %s37, %s38
      %p49 = scmp.eq.s32.totalorder %s17, 0
      %p50 = por %p48, %p49
      %p51 = scmp.ne.s32.totalorder %s37, %s38
      %p52 = scmp.eq.s32.totalorder %s18, 1
      %p53 = por %p51, %p52
      %p55 = scmp.ne.s32.totalorder %s38, %s54
      %p56 = scmp.eq.s32.totalorder %s18, 0
      %p57 = por %p55, %p56
      %s58 = ssub.s32 %s20, %s27
      %p59 = scmp.eq.s32.totalorder %s58, 0
      %s61 = sadd.s32 %s60, 1
      %s62 = scalar_select %p59, %s60, %s61
      %p65 = pneg %p59
      %p66 = scmp.eq.s32.totalorder %s12, 1
      %p67 = por %p65, %p66
      %p68 = scmp.ne.s32.totalorder %s60, %s63
      %p69 = scmp.eq.s32.totalorder %s12, 0
      %p70 = por %p68, %p69
      %p71 = scmp.ne.s32.totalorder %s60, %s63
      %p72 = scmp.eq.s32.totalorder %s17, 1
      %p73 = por %p71, %p72
      %p74 = scmp.ne.s32.totalorder %s63, %s64
      %p75 = scmp.eq.s32.totalorder %s17, 0
      %p76 = por %p74, %p75
      %p77 = scmp.ne.s32.totalorder %s63, %s64
      %p78 = scmp.eq.s32.totalorder %s18, 1
      %p79 = por %p77, %p78
      %p81 = scmp.ne.s32.totalorder %s64, %s80
      %p82 = scmp.eq.s32.totalorder %s18, 0
      %p83 = por %p81, %p82
      %s84 = ssub.s32 %s19, %s31
      %p85 = scmp.eq.s32.totalorder %s84, 0
      %s87 = sadd.s32 %s86, 1
      %s88 = scalar_select %p85, %s86, %s87
      %p91 = pneg %p85
      %p92 = scmp.eq.s32.totalorder %s12, 1
      %p93 = por %p91, %p92
      %p94 = scmp.ne.s32.totalorder %s86, %s89
      %p95 = scmp.eq.s32.totalorder %s12, 0
      %p96 = por %p94, %p95
      %p97 = scmp.ne.s32.totalorder %s86, %s89
      %p98 = scmp.eq.s32.totalorder %s17, 1
      %p99 = por %p97, %p98
      %p100 = scmp.ne.s32.totalorder %s89, %s90
      %p101 = scmp.eq.s32.totalorder %s17, 0
      %p102 = por %p100, %p101
      %p103 = scmp.ne.s32.totalorder %s89, %s90
      %p104 = scmp.eq.s32.totalorder %s18, 1
      %p105 = por %p103, %p104
      %p107 = scmp.ne.s32.totalorder %s90, %s106
      %p108 = scmp.eq.s32.totalorder %s18, 0
      %p109 = por %p107, %p108
      %s110 = ssub.s32 %s19, %s31
      %s111 = ssub.s32 %s20, %s27
      %s112 = sor.u32 %s110, %s111
      %p113 = scmp.eq.s32.totalorder %s112, 0
      %s115 = sadd.s32 %s114, 1
      %s116 = scalar_select %p113, %s114, %s115
      %p119 = pneg %p113
      %p120 = scmp.eq.s32.totalorder %s12, 1
      %p121 = por %p119, %p120
      %p122 = scmp.ne.s32.totalorder %s114, %s117
      %p123 = scmp.eq.s32.totalorder %s12, 0
      %p124 = por %p122, %p123
      %p125 = scmp.ne.s32.totalorder %s114, %s117
      %p126 = scmp.eq.s32.totalorder %s17, 1
      %p127 = por %p125, %p126
      %p128 = scmp.ne.s32.totalorder %s117, %s118
      %p129 = scmp.eq.s32.totalorder %s17, 0
      %p130 = por %p128, %p129
      %p131 = scmp.ne.s32.totalorder %s117, %s118
      %p132 = scmp.eq.s32.totalorder %s18, 1
      %p133 = por %p131, %p132
      %p135 = scmp.ne.s32.totalorder %s118, %s134
      %p136 = scmp.eq.s32.totalorder %s18, 0
      %p137 = por %p135, %p136
      %p138 = scmp.le.s32.totalorder 1, %s12
      %p139 = scmp.lt.s32.totalorder %s12, 3
      %p140 = pnand %p138, %p139
      %p141 = pneg %p140
      // Predicated region
      $region9: #{camembert_for_parsing_forward.4} parent=5 // pred_check
        _
      $region10: #{camembert_for_parsing_forward.4} parent=5 // pred_check_branch
        %143 = sbr.rel (%p140) target = $region12
      $region11: #{camembert_for_parsing_forward.4} parent=5 // pred_region
        %s144 = ssub.s32 %s12, 1
        // Predicated region
        $region13: #{camembert_for_parsing_forward.4} parent=11 // pred_check
          %p145 = pneg %p76
        $region14: #{camembert_for_parsing_forward.4} parent=11 // pred_check_branch
          %147 = sbr.rel (%p145) target = $region16
        $region15: #{camembert_for_parsing_forward.4} parent=11 // pred_region
          %p148 = scmp.lt.s32.totalorder %s22, 0
          %s149 = scalar_select %p148, %s22, 0
          %s150 = smul.addr %s149, 4
          %s151 = scalar_lea.vmem %s1, %s150
        $region16: #{camembert_for_parsing_forward.4} parent=11 // pred_fallthru
          _
      $region12: #{camembert_for_parsing_forward.4} parent=5 // pred_fallthru
        _
      %p152 = scmp.lt.s32.totalorder %s12, 2
      // Predicated region
      $region17: #{camembert_for_parsing_forward.4} parent=5 // pred_check
        %p153 = pneg %p152
      $region18: #{camembert_for_parsing_forward.4} parent=5 // pred_check_branch
        %155 = sbr.rel (%p153) target = $region20
      $region19: #{camembert_for_parsing_forward.4} parent=5 // pred_region
        // Predicated region
        $region21: #{camembert_for_parsing_forward.4} parent=19 // pred_check
          %p156 = pneg %p44
        $region22: #{camembert_for_parsing_forward.4} parent=19 // pred_check_branch
          %158 = sbr.rel (%p156) target = $region24
        $region23: #{camembert_for_parsing_forward.4} parent=19 // pred_region
          %p159 = scmp.lt.s32.totalorder %s19, 1
          %s160 = scalar_select %p159, %s19, 1
          %s161 = smul.addr %s160, 4
          %s162 = smul.addr %s161, 4
          %s163 = scalar_lea.vmem %s0, %s162
        $region24: #{camembert_for_parsing_forward.4} parent=19 // pred_fallthru
          _
        // Predicated region
        $region25: #{camembert_for_parsing_forward.4} parent=19 // pred_check
          %p164 = pneg %p96
        $region26: #{camembert_for_parsing_forward.4} parent=19 // pred_check_branch
          %166 = sbr.rel (%p164) target = $region28
        $region27: #{camembert_for_parsing_forward.4} parent=19 // pred_region
          %p167 = scmp.lt.s32.totalorder %s19, 1
          %s168 = scalar_select %p167, %s19, 1
          %s169 = smul.addr %s168, 4
          %s170 = sadd.s32 1, %s169
          %s171 = smul.addr %s170, 4
          %s172 = scalar_lea.vmem %s2, %s171
        $region28: #{camembert_for_parsing_forward.4} parent=19 // pred_fallthru
          _
      $region20: #{camembert_for_parsing_forward.4} parent=5 // pred_fallthru
        _
      %p173 = scmp.le.s32.totalorder 1, %s12
      %p174 = scmp.lt.s32.totalorder %s12, 3
      %p175 = pnand %p173, %p174
      %p176 = pneg %p175
      // Predicated region
      $region29: #{camembert_for_parsing_forward.4} parent=5 // pred_check
        _
      $region30: #{camembert_for_parsing_forward.4} parent=5 // pred_check_branch
        %178 = sbr.rel (%p175) target = $region32
      $region31: #{camembert_for_parsing_forward.4} parent=5 // pred_region
        %s179 = ssub.s32 %s12, 1
        %p180 = scmp.lt.s32.totalorder %s21, 1
        %s181 = scalar_select %p180, %s21, 1
        %s182 = smul.addr %s181, 4
        %s183 = smul.addr %s182, 4
        %s184 = scalar_lea.vmem %s0, %s183
        %p185 = pneg %p50
        %p186 = pneg %p47
        %p187 = scmp.lt.s32.totalorder %s22, 0
        %s188 = scalar_select %p187, %s22, 0
        %s189 = smul.addr %s188, 4
        %s190 = scalar_lea.vmem %s1, %s189
        %p191 = pneg %p76
        %p192 = pneg %p73
        %p193 = scmp.lt.s32.totalorder %s21, 1
        %s194 = scalar_select %p193, %s21, 1
        %s195 = smul.addr %s194, 4
        %s196 = sadd.s32 1, %s195
        %s197 = smul.addr %s196, 4
        %s198 = scalar_lea.vmem %s2, %s197
        %p199 = pneg %p102
        %p200 = pneg %p99
        %p201 = pneg %p130
        %p202 = pneg %p127
        %s203 = sand.u32 %s117, 1
        %s204 = scalar_lea.sflag [#allocation3], %s203
        %s205 = sand.u32 %s117, 1
        %s206 = smul.addr %s205, 8
        %s207 = scalar_lea.vmem [#allocation2], %s206
        %p208 = scmp.lt.s32.totalorder %s21, 1
        %s209 = scalar_select %p208, %s21, 1
        %s210 = smul.addr %s209, 4
        %s211 = smul.addr %s210, 4
        %s212 = scalar_lea.vmem %s0, %s211
        %p213 = scmp.lt.s32.totalorder %s22, 0
        %s214 = scalar_select %p213, %s22, 0
        %s215 = smul.addr %s214, 4
        %s216 = scalar_lea.vmem %s1, %s215
        %p217 = scmp.lt.s32.totalorder %s21, 1
        %s218 = scalar_select %p217, %s21, 1
        %s219 = smul.addr %s218, 4
        %s220 = sadd.s32 1, %s219
        %s221 = smul.addr %s220, 4
        %s222 = scalar_lea.vmem %s2, %s221
        %v225 = vlaneseq
        %v226 = vand.u32 %v225, 127
        %vm227 = vcmp.eq.s32.totalorder %v226, 32
        %v228 = vld [vmem:[%s212] sm:$0xf]
        %vm229 = vmpackc.low %vm227, %vm227
        %v230 = vsel %vm229, 1065369472, %v228
        %v231 = vld [vmem:[%s222] sm:$0xf]
        %v232 = vsel %vm229, 1065369472, %v231
        %v233 = vld [vmem:[%s216] sm:$0xf]
        %v234 = vld [vmem:[%s216 + $0x4] sm:$0xf]
        %v235 = vld [vmem:[%s216 + $0x8] sm:$0xf]
        %v236 = vld [vmem:[%s216 + $0xc] sm:$0xf]
        %v237 = vld [vmem:[%s216 + $0x10] sm:$0xf]
        %v238 = vld [vmem:[%s216 + $0x14] sm:$0xf]
        %v239 = vld [vmem:[%s216 + $0x18] sm:$0xf]
        %v240 = vld [vmem:[%s216 + $0x1c] sm:$0xf]
        %v241 = vld [vmem:[%s216 + $0x20] sm:$0xf]
        %v242 = vld [vmem:[%s216 + $0x24] sm:$0xf]
        %v243 = vld [vmem:[%s216 + $0x28] sm:$0xf]
        %v244 = vld [vmem:[%s216 + $0x2c] sm:$0xf]
        %v245 = vld [vmem:[%s216 + $0x30] sm:$0xf]
        %v246 = vld [vmem:[%s216 + $0x34] sm:$0xf]
        %v247 = vld [vmem:[%s216 + $0x38] sm:$0xf]
        %v248 = vld [vmem:[%s216 + $0x3c] sm:$0xf]
        %v265 = vunpack.c.l.b16 %v233
        %v266 = vunpack.c.l.b16 %v234
        %v267 = vunpack.c.l.b16 %v235
        %v268 = vunpack.c.l.b16 %v236
        %v269 = vunpack.c.l.b16 %v237
        %v270 = vunpack.c.l.b16 %v238
        %v271 = vunpack.c.l.b16 %v239
        %v272 = vunpack.c.l.b16 %v240
        %v273 = vunpack.c.l.b16 %v241
        %v274 = vunpack.c.l.b16 %v242
        %v275 = vunpack.c.l.b16 %v243
        %v276 = vunpack.c.l.b16 %v244
        %v277 = vunpack.c.l.b16 %v245
        %v278 = vunpack.c.l.b16 %v246
        %v279 = vunpack.c.l.b16 %v247
        %v280 = vunpack.c.l.b16 %v248
        %v281 = vpack.c.b16 %v266, %v265
        %v282 = vpack.c.b16 %v268, %v267
        %v283 = vpack.c.b16 %v270, %v269
        %v284 = vpack.c.b16 %v272, %v271
        %v285 = vpack.c.b16 %v274, %v273
        %v286 = vpack.c.b16 %v276, %v275
        %v287 = vpack.c.b16 %v278, %v277
        %v288 = vpack.c.b16 %v280, %v279
        %297 = vmatprep.subr.bf16.mxu0 0
        %298 = vmatpush1.bf16.msra.mxu0 %v288
        %299 = vmatprep.subr.bf16.mxu0 0
        %300 = vmatpush1.bf16.msra.mxu0 %v287
        %301 = vmatprep.subr.bf16.mxu0 0
        %302 = vmatpush1.bf16.msra.mxu0 %v286
        %303 = vmatprep.subr.bf16.mxu0 0
        %304 = vmatpush1.bf16.msra.mxu0 %v285
        %305 = vmatprep.subr.bf16.mxu0 0
        %306 = vmatpush1.bf16.msra.mxu0 %v284
        %307 = vmatprep.subr.bf16.mxu0 0
        %308 = vmatpush1.bf16.msra.mxu0 %v283
        %309 = vmatprep.subr.bf16.mxu0 0
        %310 = vmatpush1.bf16.msra.mxu0 %v282
        %311 = vmatprep.subr.bf16.mxu0 0
        %312 = vmatpush1.bf16.msra.mxu0 %v281
        %313 = vmatprep.subr.bf16.mxu0 0
        %314 = vmatpush2.bf16.msra.mxu0 0
        %315 = vmatprep.subr.bf16.mxu0 0
        %316 = vmatpush2.bf16.msra.mxu0 0
        %317 = vmatprep.subr.bf16.mxu0 0
        %318 = vmatpush2.bf16.msra.mxu0 0
        %319 = vmatprep.subr.bf16.mxu0 0
        %320 = vmatpush2.bf16.msra.mxu0 0
        %321 = vmatprep.subr.bf16.mxu0 0
        %322 = vmatpush2.bf16.msra.mxu0 0
        %323 = vmatprep.subr.bf16.mxu0 0
        %324 = vmatpush2.bf16.msra.mxu0 0
        %325 = vmatprep.subr.bf16.mxu0 0
        %326 = vmatpush2.bf16.msra.mxu0 0
        %327 = vmatprep.subr.bf16.mxu0 0
        %328 = vmatpush2.bf16.msra.mxu0 0
        %329 = vmatprep.mubr.bf16.mxu0 0
        %330 = vmatmul.mubr.bf16.gmra.mxu0 %v230
        %v331 = vpop.f32.mrf.mxu0
        %v332 = vadd.f32 0.0, %v331
        %v333 = vpop.f32.mrf.mxu0
        %v334 = vpop.f32.mrf.mxu0
        %v335 = vpop.f32.mrf.mxu0
        %336 = vdwg.mxu0
        %v337 = vpack.c.bf16 %v332, %v332
        %338 = vmatprep.subr.bf16.mxu0 0
        %339 = vmatpush1.bf16.xpose.msra.mxu0 0
        %340 = vmatprep.subr.bf16.mxu0 0
        %341 = vmatpush1.bf16.xpose.msra.mxu0 0
        %342 = vmatprep.subr.bf16.mxu0 0
        %343 = vmatpush1.bf16.xpose.msra.mxu0 0
        %344 = vmatprep.subr.bf16.mxu0 0
        %345 = vmatpush1.bf16.xpose.msra.mxu0 0
        %346 = vmatprep.subr.bf16.mxu0 0
        %347 = vmatpush1.bf16.xpose.msra.mxu0 0
        %348 = vmatprep.subr.bf16.mxu0 0
        %349 = vmatpush1.bf16.xpose.msra.mxu0 0
        %350 = vmatprep.subr.bf16.mxu0 0
        %351 = vmatpush1.bf16.xpose.msra.mxu0 0
        %352 = vmatprep.subr.bf16.mxu0 0
        %353 = vmatpush1.bf16.xpose.msra.mxu0 %v232
        %354 = vmatprep.subr.bf16.mxu0 0
        %355 = vmatpush2.bf16.xpose.msra.mxu0 0
        %356 = vmatprep.subr.bf16.mxu0 0
        %357 = vmatpush2.bf16.xpose.msra.mxu0 0
        %358 = vmatprep.subr.bf16.mxu0 0
        %359 = vmatpush2.bf16.xpose.msra.mxu0 0
        %360 = vmatprep.subr.bf16.mxu0 0
        %361 = vmatpush2.bf16.xpose.msra.mxu0 0
        %362 = vmatprep.subr.bf16.mxu0 0
        %363 = vmatpush2.bf16.xpose.msra.mxu0 0
        %364 = vmatprep.subr.bf16.mxu0 0
        %365 = vmatpush2.bf16.xpose.msra.mxu0 0
        %366 = vmatprep.subr.bf16.mxu0 0
        %367 = vmatpush2.bf16.xpose.msra.mxu0 0
        %368 = vmatprep.subr.bf16.mxu0 0
        %369 = vmatpush2.bf16.xpose.msra.mxu0 0
        %370 = vmatprep.mubr.bf16.mxu0 0
        %371 = vmatmul.mubr.bf16.gmra.mxu0 %v337
        %v372 = vpop.f32.mrf.mxu0
        %v373 = vadd.f32 0.0, %v372
        %v374 = vpop.f32.mrf.mxu0
        %v375 = vpop.f32.mrf.mxu0
        %v376 = vpop.f32.mrf.mxu0
        %377 = vdwg.mxu0
        %vm378 = vcmask 64512
        %379 = vst.msk [vmem:[%s207] sm:$0xff] %vm378, %v373
        %s380 = sand.u32 %s117, 1
        %s381 = scalar_lea.sflag [#allocation3], %s380
        %s382 = sand.u32 %s117, 1
        %s383 = smul.addr %s382, 8
        %s384 = scalar_lea.vmem [#allocation2], %s383
        // Predicated region
        $region33: #{camembert_for_parsing_forward.4} parent=31 // pred_check
          %p385 = pneg %p127
        $region34: #{camembert_for_parsing_forward.4} parent=31 // pred_check_branch
          %387 = sbr.rel (%p385) target = $region36
        $region35: #{camembert_for_parsing_forward.4} parent=31 // pred_region
          %s389 = ssub.s32 128, 128
          %390 = vsyncadd %s381, %s389
          %s391 = sadd.s32 %s22, %s21
          %s392 = smul.addr %s391, 128
          %s393 = scalar_lea.hbm %s3, %s392
          %s395 = sshll.u32 %s384, 4
          %s396 = int_to_ptr.vmem [resolvable:$true] %s395
          %398 = dma.vmem_to_hbm [thread:$0]  %s396, 128, %s393, %s381
        $region36: #{camembert_for_parsing_forward.4} parent=31 // pred_fallthru
          _
      $region32: #{camembert_for_parsing_forward.4} parent=5 // pred_fallthru
        _
      %p399 = scmp.le.s32.totalorder 2, %s12
      // Predicated region
      $region37: #{camembert_for_parsing_forward.4} parent=5 // pred_check
        %p400 = pneg %p399
      $region38: #{camembert_for_parsing_forward.4} parent=5 // pred_check_branch
        %402 = sbr.rel (%p400) target = $region40
      $region39: #{camembert_for_parsing_forward.4} parent=5 // pred_region
        %s403 = ssub.s32 %s12, 2
        // Predicated region
        $region41: #{camembert_for_parsing_forward.4} parent=39 // pred_check
          %p404 = pneg %p133
        $region42: #{camembert_for_parsing_forward.4} parent=39 // pred_check_branch
          %406 = sbr.rel (%p404) target = $region44
        $region43: #{camembert_for_parsing_forward.4} parent=39 // pred_region
          %s407 = sand.u32 %s118, 1
          %s408 = scalar_lea.sflag [#allocation3], %s407
          %s409 = sand.u32 %s118, 1
          %s410 = smul.addr %s409, 8
          %s411 = scalar_lea.vmem [#allocation2], %s410
          %412 = dma.done %s408, 128
        $region44: #{camembert_for_parsing_forward.4} parent=39 // pred_fallthru
          _
      $region40: #{camembert_for_parsing_forward.4} parent=5 // pred_fallthru
        _
    $region6: #{camembert_for_parsing_forward.4} parent=1 // loop_footer
      %s16 = sadd.s32 1, %s12
    $region7: #{camembert_for_parsing_forward.4} parent=1 // loop_footer_branch
      %11 = sbr.rel target = $region3
    $region8: #{camembert_for_parsing_forward.4} parent=1 // loop_exit
      _
    %413 = vsyncpa [#allocation3], 1
    %s414 = scalar_lea.sflag [#allocation3], 1
    %415 = vsyncpa %s414, 1

// kernel: camembert_for_parsing_forward.3
$region0: #{camembert_for_parsing_forward.3}
  #allocation0 [shape = 'u32[]', space=smem, size = 0x4, offset = 0x4, fixed_abs, tag = 'smem constant byte address 0x4 - core index']
  #allocation1 [shape = 'u32[144,128]{1,0:T(1,128)}', space=vmem, size = 0x12000, scoped, tag = 'internal scratch']
  %s0 = inlined_call_operand.vmem [shape: bf16[16,128], index: 0, kind: input, shape index: {}]
  %s1 = inlined_call_operand.hbm [shape: bf16[128,512], index: 1, kind: input, shape index: {}]
  %s2 = inlined_call_operand.hbm [shape: f32[1,512], index: 2, kind: input, shape index: {}]
  %s3 = inlined_call_operand.hbm [shape: bf16[4,128,128], index: 3, kind: input, shape index: {}]
  %s4 = inlined_call_operand.hbm [shape: f32[1,512], index: 4, kind: input, shape index: {}]
  %s5 = inlined_call_operand.vmem [shape: bf16[16,512], index: 5, kind: output, shape index: {}]
  %s6 = sld [smem:[#allocation0]]
  $region46: #{camembert_for_parsing_forward.3} parent=0
    _
  %s8 = ssub.s32 1, %s6
  %s9 = scalar_select 0, %s8, %s6
  $region1: #{camembert_for_parsing_forward.3} parent=0
    #allocation2 [shape = 'u8[131072]{0}', space=vmem, size = 0x20000, scoped, tag = 'input window, operand 1, single buffered']
    #allocation3 [shape = 's32[1]{0}', space=sflag, size = 0x4, scoped, tag = 'scoped memory for camembert_for_parsing_forward.3']
    #allocation4 [shape = 'u8[2048]{0}', space=vmem, size = 0x800, scoped, tag = 'input window, operand 2, single buffered']
    #allocation5 [shape = 's32[1]{0}', space=sflag, size = 0x4, scoped, tag = 'scoped memory for camembert_for_parsing_forward.3']
    #allocation6 [shape = 'u8[131072]{0}', space=vmem, size = 0x20000, scoped, tag = 'input window, operand 3, single buffered']
    #allocation7 [shape = 'u8[2048]{0}', space=vmem, size = 0x800, scoped, tag = 'input window, operand 4, single buffered']
    #allocation8 [shape = 's32[1]{0}', space=sflag, size = 0x4, scoped, tag = 'scoped memory for camembert_for_parsing_forward.3']
    %10 = vsyncpa [#allocation3], 0
    %11 = vsyncpa [#allocation5], 0
    %12 = vsyncpa [#allocation8], 0
    // Predicated region
    $region2: #{camembert_for_parsing_forward.3} parent=1 // pred_check
      _
    $region3: #{camembert_for_parsing_forward.3} parent=1 // pred_check_branch
      %14 = sbr.rel (0) target = $region5
    $region4: #{camembert_for_parsing_forward.3} parent=1 // pred_region
      _
    $region5: #{camembert_for_parsing_forward.3} parent=1 // pred_fallthru
      _
    // Predicated region
    $region6: #{camembert_for_parsing_forward.3} parent=1 // pred_check
      _
    $region7: #{camembert_for_parsing_forward.3} parent=1 // pred_check_branch
      %16 = sbr.rel (0) target = $region9
    $region8: #{camembert_for_parsing_forward.3} parent=1 // pred_region
      %s18 = ssub.s32 4096, 4096
      %19 = vsyncadd [#allocation3], %s18
      %s20 = sshll.u32 [#allocation2], 4
      %s21 = int_to_ptr.vmem [resolvable:$true] %s20
      %26 = dma.hbm_to_vmem [thread:$0]  %s1, 4096, %s21, [#allocation3], 256, 256, 16
    $region9: #{camembert_for_parsing_forward.3} parent=1 // pred_fallthru
      _
    // Predicated region
    $region10: #{camembert_for_parsing_forward.3} parent=1 // pred_check
      _
    $region11: #{camembert_for_parsing_forward.3} parent=1 // pred_check_branch
      %28 = sbr.rel (0) target = $region13
    $region12: #{camembert_for_parsing_forward.3} parent=1 // pred_region
      %s30 = ssub.s32 64, 64
      %31 = vsyncadd [#allocation5], %s30
      %s33 = sshll.u32 [#allocation4], 4
      %s34 = int_to_ptr.vmem [resolvable:$true] %s33
      %36 = dma.hbm_to_vmem [thread:$0]  %s2, 64, %s34, [#allocation5]
    $region13: #{camembert_for_parsing_forward.3} parent=1 // pred_fallthru
      _
    // Predicated region
    $region14: #{camembert_for_parsing_forward.3} parent=1 // pred_check
      _
    $region15: #{camembert_for_parsing_forward.3} parent=1 // pred_check_branch
      %38 = sbr.rel (0) target = $region17
    $region16: #{camembert_for_parsing_forward.3} parent=1 // pred_region
      %s40 = ssub.s32 4096, 4096
      %41 = vsyncadd [#allocation5], %s40
      %s42 = sshll.u32 [#allocation6], 4
      %s43 = int_to_ptr.vmem [resolvable:$true] %s42
      %48 = dma.hbm_to_vmem [thread:$0]  %s3, 4096, %s43, [#allocation5], 64, 64, 4
    $region17: #{camembert_for_parsing_forward.3} parent=1 // pred_fallthru
      _
    // Predicated region
    $region18: #{camembert_for_parsing_forward.3} parent=1 // pred_check
      _
    $region19: #{camembert_for_parsing_forward.3} parent=1 // pred_check_branch
      %50 = sbr.rel (0) target = $region21
    $region20: #{camembert_for_parsing_forward.3} parent=1 // pred_region
      %s52 = ssub.s32 64, 64
      %53 = vsyncadd [#allocation8], %s52
      %s55 = sshll.u32 [#allocation7], 4
      %s56 = int_to_ptr.vmem [resolvable:$true] %s55
      %58 = dma.hbm_to_vmem [thread:$0]  %s4, 64, %s56, [#allocation8]
    $region21: #{camembert_for_parsing_forward.3} parent=1 // pred_fallthru
      _
    // Predicated region
    $region22: #{camembert_for_parsing_forward.3} parent=1 // pred_check
      _
    $region23: #{camembert_for_parsing_forward.3} parent=1 // pred_check_branch
      %60 = sbr.rel (0) target = $region25
    $region24: #{camembert_for_parsing_forward.3} parent=1 // pred_region
      %61 = dma.done [#allocation3], 4096
    $region25: #{camembert_for_parsing_forward.3} parent=1 // pred_fallthru
      _
    // Predicated region
    $region26: #{camembert_for_parsing_forward.3} parent=1 // pred_check
      _
    $region27: #{camembert_for_parsing_forward.3} parent=1 // pred_check_branch
      %63 = sbr.rel (0) target = $region29
    $region28: #{camembert_for_parsing_forward.3} parent=1 // pred_region
      %64 = dma.done [#allocation5], 64
    $region29: #{camembert_for_parsing_forward.3} parent=1 // pred_fallthru
      _
    // Predicated region
    $region30: #{camembert_for_parsing_forward.3} parent=1 // pred_check
      _
    $region31: #{camembert_for_parsing_forward.3} parent=1 // pred_check_branch
      %66 = sbr.rel (0) target = $region33
    $region32: #{camembert_for_parsing_forward.3} parent=1 // pred_region
      %67 = dma.done [#allocation5], 4096
    $region33: #{camembert_for_parsing_forward.3} parent=1 // pred_fallthru
      _
    // Predicated region
    $region34: #{camembert_for_parsing_forward.3} parent=1 // pred_check
      _
    $region35: #{camembert_for_parsing_forward.3} parent=1 // pred_check_branch
      %69 = sbr.rel (0) target = $region37
    $region36: #{camembert_for_parsing_forward.3} parent=1 // pred_region
      %70 = dma.done [#allocation8], 64
    $region37: #{camembert_for_parsing_forward.3} parent=1 // pred_fallthru
      _
    %v72 = vld [vmem:[%s0] sm:$0xf]
    %v73 = vld [vmem:[%s0 + $0x4] sm:$0xf]
    %v74 = vld [vmem:[#allocation2] sm:$0xff]
    %v75 = vld [vmem:[#allocation2 + $0x8] sm:$0xff]
    %v76 = vld [vmem:[#allocation2 + $0x10] sm:$0xff]
    %v77 = vld [vmem:[#allocation2 + $0x18] sm:$0xff]
    %v78 = vld [vmem:[#allocation2 + $0x20] sm:$0xff]
    %v79 = vld [vmem:[#allocation2 + $0x28] sm:$0xff]
    %v80 = vld [vmem:[#allocation2 + $0x30] sm:$0xff]
    %v81 = vld [vmem:[#allocation2 + $0x38] sm:$0xff]
    %v82 = vld [vmem:[#allocation2 + $0x40] sm:$0xff]
    %v83 = vld [vmem:[#allocation2 + $0x48] sm:$0xff]
    %v84 = vld [vmem:[#allocation2 + $0x50] sm:$0xff]
    %v85 = vld [vmem:[#allocation2 + $0x58] sm:$0xff]
    %v86 = vld [vmem:[#allocation2 + $0x60] sm:$0xff]
    %v87 = vld [vmem:[#allocation2 + $0x68] sm:$0xff]
    %v88 = vld [vmem:[#allocation2 + $0x70] sm:$0xff]
    %v89 = vld [vmem:[#allocation2 + $0x78] sm:$0xff]
    %v90 = vld [vmem:[#allocation2 + $0x80] sm:$0xff]
    %v91 = vld [vmem:[#allocation2 + $0x88] sm:$0xff]
    %v92 = vld [vmem:[#allocation2 + $0x90] sm:$0xff]
    %v93 = vld [vmem:[#allocation2 + $0x98] sm:$0xff]
    %v94 = vld [vmem:[#allocation2 + $0xa0] sm:$0xff]
    %v95 = vld [vmem:[#allocation2 + $0xa8] sm:$0xff]
    %v96 = vld [vmem:[#allocation2 + $0xb0] sm:$0xff]
    %v97 = vld [vmem:[#allocation2 + $0xb8] sm:$0xff]
    %v98 = vld [vmem:[#allocation2 + $0xc0] sm:$0xff]
    %v99 = vld [vmem:[#allocation2 + $0xc8] sm:$0xff]
    %v100 = vld [vmem:[#allocation2 + $0xd0] sm:$0xff]
    %v101 = vld [vmem:[#allocation2 + $0xd8] sm:$0xff]
    %v102 = vld [vmem:[#allocation2 + $0xe0] sm:$0xff]
    %v103 = vld [vmem:[#allocation2 + $0xe8] sm:$0xff]
    %v104 = vld [vmem:[#allocation2 + $0xf0] sm:$0xff]
    %v105 = vld [vmem:[#allocation2 + $0xf8] sm:$0xff]
    %v106 = vld [vmem:[#allocation4] sm:$0xf]
    %v108 = vlaneseq
    %v109 = vshrl.u32 %v108, 7
    %v110 = vsub.s32 0, %v109
    %v111 = vrot.slane %v106, %v110
    %v112 = vlaneseq
    %v113 = vshrl.u32 %v112, 7
    %v114 = vsub.s32 1, %v113
    %v115 = vrot.slane %v106, %v114
    %v116 = vlaneseq
    %v117 = vshrl.u32 %v116, 7
    %v118 = vsub.s32 2, %v117
    %v119 = vrot.slane %v106, %v118
    %v120 = vlaneseq
    %v121 = vshrl.u32 %v120, 7
    %v122 = vsub.s32 3, %v121
    %v123 = vrot.slane %v106, %v122
    %v130 = vunpack.c.l.b16 %v72
    %v131 = vunpack.c.l.b16 %v73
    %v132 = vpack.c.b16 %v131, %v130
    %v166 = vunpack.c.l.b16 %v74
    %v167 = vunpack.c.h.b16 %v74
    %v168 = vunpack.c.l.b16 %v75
    %v169 = vunpack.c.h.b16 %v75
    %v170 = vunpack.c.l.b16 %v76
    %v171 = vunpack.c.h.b16 %v76
    %v172 = vunpack.c.l.b16 %v77
    %v173 = vunpack.c.h.b16 %v77
    %v174 = vunpack.c.l.b16 %v78
    %v175 = vunpack.c.h.b16 %v78
    %v176 = vunpack.c.l.b16 %v79
    %v177 = vunpack.c.h.b16 %v79
    %v178 = vunpack.c.l.b16 %v80
    %v179 = vunpack.c.h.b16 %v80
    %v180 = vunpack.c.l.b16 %v81
    %v181 = vunpack.c.h.b16 %v81
    %v182 = vunpack.c.l.b16 %v82
    %v183 = vunpack.c.h.b16 %v82
    %v184 = vunpack.c.l.b16 %v83
    %v185 = vunpack.c.h.b16 %v83
    %v186 = vunpack.c.l.b16 %v84
    %v187 = vunpack.c.h.b16 %v84
    %v188 = vunpack.c.l.b16 %v85
    %v189 = vunpack.c.h.b16 %v85
    %v190 = vunpack.c.l.b16 %v86
    %v191 = vunpack.c.h.b16 %v86
    %v192 = vunpack.c.l.b16 %v87
    %v193 = vunpack.c.h.b16 %v87
    %v194 = vunpack.c.l.b16 %v88
    %v195 = vunpack.c.h.b16 %v88
    %v196 = vunpack.c.l.b16 %v89
    %v197 = vunpack.c.h.b16 %v89
    %v198 = vunpack.c.l.b16 %v90
    %v199 = vunpack.c.h.b16 %v90
    %v200 = vunpack.c.l.b16 %v91
    %v201 = vunpack.c.h.b16 %v91
    %v202 = vunpack.c.l.b16 %v92
    %v203 = vunpack.c.h.b16 %v92
    %v204 = vunpack.c.l.b16 %v93
    %v205 = vunpack.c.h.b16 %v93
    %v206 = vunpack.c.l.b16 %v94
    %v207 = vunpack.c.h.b16 %v94
    %v208 = vunpack.c.l.b16 %v95
    %v209 = vunpack.c.h.b16 %v95
    %v210 = vunpack.c.l.b16 %v96
    %v211 = vunpack.c.h.b16 %v96
    %v212 = vunpack.c.l.b16 %v97
    %v213 = vunpack.c.h.b16 %v97
    %v214 = vunpack.c.l.b16 %v98
    %v215 = vunpack.c.h.b16 %v98
    %v216 = vunpack.c.l.b16 %v99
    %v217 = vunpack.c.h.b16 %v99
    %v218 = vunpack.c.l.b16 %v100
    %v219 = vunpack.c.h.b16 %v100
    %v220 = vunpack.c.l.b16 %v101
    %v221 = vunpack.c.h.b16 %v101
    %v222 = vunpack.c.l.b16 %v102
    %v223 = vunpack.c.h.b16 %v102
    %v224 = vunpack.c.l.b16 %v103
    %v225 = vunpack.c.h.b16 %v103
    %v226 = vunpack.c.l.b16 %v104
    %v227 = vunpack.c.h.b16 %v104
    %v228 = vunpack.c.l.b16 %v105
    %v229 = vunpack.c.h.b16 %v105
    %v230 = vpack.c.b16 %v170, %v166
    %v231 = vpack.c.b16 %v171, %v167
    %v232 = vpack.c.b16 %v172, %v168
    %v233 = vpack.c.b16 %v173, %v169
    %v234 = vpack.c.b16 %v178, %v174
    %v235 = vpack.c.b16 %v179, %v175
    %v236 = vpack.c.b16 %v180, %v176
    %v237 = vpack.c.b16 %v181, %v177
    %v238 = vpack.c.b16 %v186, %v182
    %v239 = vpack.c.b16 %v187, %v183
    %v240 = vpack.c.b16 %v188, %v184
    %v241 = vpack.c.b16 %v189, %v185
    %v242 = vpack.c.b16 %v194, %v190
    %v243 = vpack.c.b16 %v195, %v191
    %v244 = vpack.c.b16 %v196, %v192
    %v245 = vpack.c.b16 %v197, %v193
    %v246 = vpack.c.b16 %v202, %v198
    %v247 = vpack.c.b16 %v203, %v199
    %v248 = vpack.c.b16 %v204, %v200
    %v249 = vpack.c.b16 %v205, %v201
    %v250 = vpack.c.b16 %v210, %v206
    %v251 = vpack.c.b16 %v211, %v207
    %v252 = vpack.c.b16 %v212, %v208
    %v253 = vpack.c.b16 %v213, %v209
    %v254 = vpack.c.b16 %v218, %v214
    %v255 = vpack.c.b16 %v219, %v215
    %v256 = vpack.c.b16 %v220, %v216
    %v257 = vpack.c.b16 %v221, %v217
    %v258 = vpack.c.b16 %v226, %v222
    %v259 = vpack.c.b16 %v227, %v223
    %v260 = vpack.c.b16 %v228, %v224
    %v261 = vpack.c.b16 %v229, %v225
    %294 = vmatprep.subr.bf16.mxu0 %v259
    %295 = vmatpush1.bf16.msra.mxu0 %v258
    %296 = vmatprep.subr.bf16.mxu0 %v255
    %297 = vmatpush1.bf16.msra.mxu0 %v254
    %298 = vmatprep.subr.bf16.mxu0 %v251
    %299 = vmatpush1.bf16.msra.mxu0 %v250
    %300 = vmatprep.subr.bf16.mxu0 %v247
    %301 = vmatpush1.bf16.msra.mxu0 %v246
    %302 = vmatprep.subr.bf16.mxu0 %v243
    %303 = vmatpush1.bf16.msra.mxu0 %v242
    %304 = vmatprep.subr.bf16.mxu0 %v239
    %305 = vmatpush1.bf16.msra.mxu0 %v238
    %306 = vmatprep.subr.bf16.mxu0 %v235
    %307 = vmatpush1.bf16.msra.mxu0 %v234
    %308 = vmatprep.subr.bf16.mxu0 %v231
    %309 = vmatpush1.bf16.msra.mxu0 %v230
    %310 = vmatprep.subr.bf16.mxu0 0
    %311 = vmatpush2.bf16.msra.mxu0 0
    %312 = vmatprep.subr.bf16.mxu0 0
    %313 = vmatpush2.bf16.msra.mxu0 0
    %314 = vmatprep.subr.bf16.mxu0 0
    %315 = vmatpush2.bf16.msra.mxu0 0
    %316 = vmatprep.subr.bf16.mxu0 0
    %317 = vmatpush2.bf16.msra.mxu0 0
    %318 = vmatprep.subr.bf16.mxu0 0
    %319 = vmatpush2.bf16.msra.mxu0 0
    %320 = vmatprep.subr.bf16.mxu0 0
    %321 = vmatpush2.bf16.msra.mxu0 0
    %322 = vmatprep.subr.bf16.mxu0 0
    %323 = vmatpush2.bf16.msra.mxu0 0
    %324 = vmatprep.subr.bf16.mxu0 0
    %325 = vmatpush2.bf16.msra.mxu0 0
    %326 = vmatprep.mubr.bf16.mxu0 0
    %327 = vmatmul.mubr.bf16.gmra.mxu0 %v132
    %v328 = vpop.f32.mrf.mxu0
    %v329 = vadd.f32 %v111, %v328
    %v330 = vpop.f32.mrf.mxu0
    %v331 = vadd.f32 %v115, %v330
    %v332 = vpop.f32.mrf.mxu0
    %v333 = vadd.f32 %v111, %v332
    %v334 = vpop.f32.mrf.mxu0
    %v335 = vadd.f32 %v115, %v334
    %336 = vdwg.mxu0
    %337 = vmatprep.subr.bf16.mxu0 %v261
    %338 = vmatpush1.bf16.msra.mxu0 %v260
    %339 = vmatprep.subr.bf16.mxu0 %v257
    %340 = vmatpush1.bf16.msra.mxu0 %v256
    %341 = vmatprep.subr.bf16.mxu0 %v253
    %342 = vmatpush1.bf16.msra.mxu0 %v252
    %343 = vmatprep.subr.bf16.mxu0 %v249
    %344 = vmatpush1.bf16.msra.mxu0 %v248
    %345 = vmatprep.subr.bf16.mxu0 %v245
    %346 = vmatpush1.bf16.msra.mxu0 %v244
    %347 = vmatprep.subr.bf16.mxu0 %v241
    %348 = vmatpush1.bf16.msra.mxu0 %v240
    %349 = vmatprep.subr.bf16.mxu0 %v237
    %350 = vmatpush1.bf16.msra.mxu0 %v236
    %351 = vmatprep.subr.bf16.mxu0 %v233
    %352 = vmatpush1.bf16.msra.mxu0 %v232
    %353 = vmatprep.subr.bf16.mxu0 0
    %354 = vmatpush2.bf16.msra.mxu0 0
    %355 = vmatprep.subr.bf16.mxu0 0
    %356 = vmatpush2.bf16.msra.mxu0 0
    %357 = vmatprep.subr.bf16.mxu0 0
    %358 = vmatpush2.bf16.msra.mxu0 0
    %359 = vmatprep.subr.bf16.mxu0 0
    %360 = vmatpush2.bf16.msra.mxu0 0
    %361 = vmatprep.subr.bf16.mxu0 0
    %362 = vmatpush2.bf16.msra.mxu0 0
    %363 = vmatprep.subr.bf16.mxu0 0
    %364 = vmatpush2.bf16.msra.mxu0 0
    %365 = vmatprep.subr.bf16.mxu0 0
    %366 = vmatpush2.bf16.msra.mxu0 0
    %367 = vmatprep.subr.bf16.mxu0 0
    %368 = vmatpush2.bf16.msra.mxu0 0
    %369 = vmatprep.mubr.bf16.mxu0 0
    %370 = vmatmul.mubr.bf16.gmra.mxu0 %v132
    %v371 = vpop.f32.mrf.mxu0
    %v372 = vadd.f32 %v119, %v371
    %v373 = vpop.f32.mrf.mxu0
    %v374 = vadd.f32 %v123, %v373
    %v375 = vpop.f32.mrf.mxu0
    %v376 = vadd.f32 %v119, %v375
    %v377 = vpop.f32.mrf.mxu0
    %v378 = vadd.f32 %v123, %v377
    %379 = vdwg.mxu0
    %v380 = vmul.f32 %v329, %v329
    %v381 = vmul.f32 %v331, %v331
    %v382 = vmul.f32 %v372, %v372
    %v383 = vmul.f32 %v374, %v374
    %v384 = vmul.f32 %v333, %v333
    %v385 = vmul.f32 %v335, %v335
    %v386 = vmul.f32 %v376, %v376
    %v387 = vmul.f32 %v378, %v378
    %v388 = vmul.f32 %v329, %v380
    %v389 = vmul.f32 %v331, %v381
    %v390 = vmul.f32 %v372, %v382
    %v391 = vmul.f32 %v374, %v383
    %v392 = vmul.f32 %v333, %v384
    %v393 = vmul.f32 %v335, %v385
    %v394 = vmul.f32 %v376, %v386
    %v395 = vmul.f32 %v378, %v387
    %v396 = vmul.f32 %v388, 0.044715
    %v397 = vmul.f32 %v389, 0.044715
    %v398 = vmul.f32 %v390, 0.044715
    %v399 = vmul.f32 %v391, 0.044715
    %v400 = vmul.f32 %v392, 0.044715
    %v401 = vmul.f32 %v393, 0.044715
    %v402 = vmul.f32 %v394, 0.044715
    %v403 = vmul.f32 %v395, 0.044715
    %v404 = vadd.f32 %v329, %v396
    %v405 = vadd.f32 %v331, %v397
    %v406 = vadd.f32 %v372, %v398
    %v407 = vadd.f32 %v374, %v399
    %v408 = vadd.f32 %v333, %v400
    %v409 = vadd.f32 %v335, %v401
    %v410 = vadd.f32 %v376, %v402
    %v411 = vadd.f32 %v378, %v403
    %v412 = vmul.f32 %v404, 0.7978846
    %v413 = vmul.f32 %v405, 0.7978846
    %v414 = vmul.f32 %v406, 0.7978846
    %v415 = vmul.f32 %v407, 0.7978846
    %v416 = vmul.f32 %v408, 0.7978846
    %v417 = vmul.f32 %v409, 0.7978846
    %v418 = vmul.f32 %v410, 0.7978846
    %v419 = vmul.f32 %v411, 0.7978846
    %v420 = vtanh.pop %v412
    %v421 = vtanh.pop %v413
    %v422 = vtanh.pop %v414
    %v423 = vtanh.pop %v415
    %v424 = vtanh.pop %v416
    %v425 = vtanh.pop %v417
    %v426 = vtanh.pop %v418
    %v427 = vtanh.pop %v419
    %v428 = vadd.f32 %v420, 1.0
    %v429 = vadd.f32 %v421, 1.0
    %v430 = vadd.f32 %v422, 1.0
    %v431 = vadd.f32 %v423, 1.0
    %v432 = vadd.f32 %v424, 1.0
    %v433 = vadd.f32 %v425, 1.0
    %v434 = vadd.f32 %v426, 1.0
    %v435 = vadd.f32 %v427, 1.0
    %v436 = vmul.f32 %v428, 0.5
    %v437 = vmul.f32 %v429, 0.5
    %v438 = vmul.f32 %v430, 0.5
    %v439 = vmul.f32 %v431, 0.5
    %v440 = vmul.f32 %v432, 0.5
    %v441 = vmul.f32 %v433, 0.5
    %v442 = vmul.f32 %v434, 0.5
    %v443 = vmul.f32 %v435, 0.5
    %v444 = vmul.f32 %v329, %v436
    %v445 = vmul.f32 %v331, %v437
    %v446 = vmul.f32 %v372, %v438
    %v447 = vmul.f32 %v374, %v439
    %v448 = vmul.f32 %v333, %v440
    %v449 = vmul.f32 %v335, %v441
    %v450 = vmul.f32 %v376, %v442
    %v451 = vmul.f32 %v378, %v443
    %v452 = vpack.c.bf16 %v448, %v444
    %v453 = vpack.c.bf16 %v449, %v445
    %v454 = vpack.c.bf16 %v450, %v446
    %v455 = vpack.c.bf16 %v451, %v447
    %v456 = vld [vmem:[#allocation6] sm:$0xf]
    %v457 = vld [vmem:[#allocation6 + $0x4] sm:$0xf]
    %v458 = vld [vmem:[#allocation6 + $0x8] sm:$0xf]
    %v459 = vld [vmem:[#allocation6 + $0xc] sm:$0xf]
    %v460 = vld [vmem:[#allocation6 + $0x10] sm:$0xf]
    %v461 = vld [vmem:[#allocation6 + $0x14] sm:$0xf]
    %v462 = vld [vmem:[#allocation6 + $0x18] sm:$0xf]
    %v463 = vld [vmem:[#allocation6 + $0x1c] sm:$0xf]
    %v464 = vld [vmem:[#allocation6 + $0x20] sm:$0xf]
    %v465 = vld [vmem:[#allocation6 + $0x24] sm:$0xf]
    %v466 = vld [vmem:[#allocation6 + $0x28] sm:$0xf]
    %v467 = vld [vmem:[#allocation6 + $0x2c] sm:$0xf]
    %v468 = vld [vmem:[#allocation6 + $0x30] sm:$0xf]
    %v469 = vld [vmem:[#allocation6 + $0x34] sm:$0xf]
    %v470 = vld [vmem:[#allocation6 + $0x38] sm:$0xf]
    %v471 = vld [vmem:[#allocation6 + $0x3c] sm:$0xf]
    %v472 = vld [vmem:[#allocation7] sm:$0x1]
    %v474 = vlaneseq
    %v475 = vshrl.u32 %v474, 7
    %v476 = vsub.s32 0, %v475
    %v477 = vrot.slane %v472, %v476
    %v495 = vunpack.c.l.b16 %v456
    %v496 = vunpack.c.l.b16 %v457
    %v497 = vunpack.c.l.b16 %v458
    %v498 = vunpack.c.l.b16 %v459
    %v499 = vunpack.c.l.b16 %v460
    %v500 = vunpack.c.l.b16 %v461
    %v501 = vunpack.c.l.b16 %v462
    %v502 = vunpack.c.l.b16 %v463
    %v503 = vunpack.c.l.b16 %v464
    %v504 = vunpack.c.l.b16 %v465
    %v505 = vunpack.c.l.b16 %v466
    %v506 = vunpack.c.l.b16 %v467
    %v507 = vunpack.c.l.b16 %v468
    %v508 = vunpack.c.l.b16 %v469
    %v509 = vunpack.c.l.b16 %v470
    %v510 = vunpack.c.l.b16 %v471
    %v511 = vpack.c.b16 %v496, %v495
    %v512 = vpack.c.b16 %v498, %v497
    %v513 = vpack.c.b16 %v500, %v499
    %v514 = vpack.c.b16 %v502, %v501
    %v515 = vpack.c.b16 %v504, %v503
    %v516 = vpack.c.b16 %v506, %v505
    %v517 = vpack.c.b16 %v508, %v507
    %v518 = vpack.c.b16 %v510, %v509
    %527 = vmatprep.subr.bf16.mxu0 0
    %528 = vmatpush1.bf16.msra.mxu0 %v518
    %529 = vmatprep.subr.bf16.mxu0 0
    %530 = vmatpush1.bf16.msra.mxu0 %v517
    %531 = vmatprep.subr.bf16.mxu0 0
    %532 = vmatpush1.bf16.msra.mxu0 %v516
    %533 = vmatprep.subr.bf16.mxu0 0
    %534 = vmatpush1.bf16.msra.mxu0 %v515
    %535 = vmatprep.subr.bf16.mxu0 0
    %536 = vmatpush1.bf16.msra.mxu0 %v514
    %537 = vmatprep.subr.bf16.mxu0 0
    %538 = vmatpush1.bf16.msra.mxu0 %v513
    %539 = vmatprep.subr.bf16.mxu0 0
    %540 = vmatpush1.bf16.msra.mxu0 %v512
    %541 = vmatprep.subr.bf16.mxu0 0
    %542 = vmatpush1.bf16.msra.mxu0 %v511
    %543 = vmatprep.subr.bf16.mxu0 0
    %544 = vmatpush2.bf16.msra.mxu0 0
    %545 = vmatprep.subr.bf16.mxu0 0
    %546 = vmatpush2.bf16.msra.mxu0 0
    %547 = vmatprep.subr.bf16.mxu0 0
    %548 = vmatpush2.bf16.msra.mxu0 0
    %549 = vmatprep.subr.bf16.mxu0 0
    %550 = vmatpush2.bf16.msra.mxu0 0
    %551 = vmatprep.subr.bf16.mxu0 0
    %552 = vmatpush2.bf16.msra.mxu0 0
    %553 = vmatprep.subr.bf16.mxu0 0
    %554 = vmatpush2.bf16.msra.mxu0 0
    %555 = vmatprep.subr.bf16.mxu0 0
    %556 = vmatpush2.bf16.msra.mxu0 0
    %557 = vmatprep.subr.bf16.mxu0 0
    %558 = vmatpush2.bf16.msra.mxu0 0
    %559 = vmatprep.mubr.bf16.mxu0 0
    %560 = vmatmul.mubr.bf16.gmra.mxu0 %v452
    %v561 = vpop.f32.mrf.mxu0
    %v562 = vadd.f32 %v477, %v561
    %v563 = vpop.f32.mrf.mxu0
    %v564 = vpop.f32.mrf.mxu0
    %v565 = vadd.f32 %v477, %v564
    %v566 = vpop.f32.mrf.mxu0
    %567 = vdwg.mxu0
    %v568 = vmul.f32 %v562, %v562
    %v569 = vmul.f32 %v565, %v565
    %v570 = vmul.f32 %v562, %v568
    %v571 = vmul.f32 %v565, %v569
    %v572 = vmul.f32 %v570, 0.044715
    %v573 = vmul.f32 %v571, 0.044715
    %v574 = vadd.f32 %v562, %v572
    %v575 = vadd.f32 %v565, %v573
    %v576 = vmul.f32 %v574, 0.7978846
    %v577 = vmul.f32 %v575, 0.7978846
    %v578 = vtanh.pop %v576
    %v579 = vtanh.pop %v577
    %v580 = vadd.f32 %v578, 1.0
    %v581 = vadd.f32 %v579, 1.0
    %v582 = vmul.f32 %v580, 0.5
    %v583 = vmul.f32 %v581, 0.5
    %v584 = vmul.f32 %v562, %v582
    %v585 = vmul.f32 %v565, %v583
    %v586 = vpack.c.bf16 %v585, %v584
    %v588 = vunpack.c.l.b16 %v586
    %v589 = vunpack.c.h.b16 %v586
    %v590 = vpack.c.b16 %v588, %v588
    %v591 = vpack.c.b16 %v589, %v589
    %594 = vst [vmem:[%s5] sm:$0xf] %v590
    %595 = vst [vmem:[%s5 + $0x10] sm:$0xf] %v591
    %s596 = scalar_lea.vmem [#allocation6], 64
    %v597 = vld [vmem:[%s596] sm:$0xf]
    %v598 = vld [vmem:[%s596 + $0x4] sm:$0xf]
    %v599 = vld [vmem:[%s596 + $0x8] sm:$0xf]
    %v600 = vld [vmem:[%s596 + $0xc] sm:$0xf]
    %v601 = vld [vmem:[%s596 + $0x10] sm:$0xf]
    %v602 = vld [vmem:[%s596 + $0x14] sm:$0xf]
    %v603 = vld [vmem:[%s596 + $0x18] sm:$0xf]
    %v604 = vld [vmem:[%s596 + $0x1c] sm:$0xf]
    %v605 = vld [vmem:[%s596 + $0x20] sm:$0xf]
    %v606 = vld [vmem:[%s596 + $0x24] sm:$0xf]
    %v607 = vld [vmem:[%s596 + $0x28] sm:$0xf]
    %v608 = vld [vmem:[%s596 + $0x2c] sm:$0xf]
    %v609 = vld [vmem:[%s596 + $0x30] sm:$0xf]
    %v610 = vld [vmem:[%s596 + $0x34] sm:$0xf]
    %v611 = vld [vmem:[%s596 + $0x38] sm:$0xf]
    %v612 = vld [vmem:[%s596 + $0x3c] sm:$0xf]
    %v613 = vld [vmem:[#allocation7 + $0x1] sm:$0x1]
    %v615 = vlaneseq
    %v616 = vshrl.u32 %v615, 7
    %v617 = vsub.s32 0, %v616
    %v618 = vrot.slane %v613, %v617
    %v636 = vunpack.c.l.b16 %v597
    %v637 = vunpack.c.l.b16 %v598
    %v638 = vunpack.c.l.b16 %v599
    %v639 = vunpack.c.l.b16 %v600
    %v640 = vunpack.c.l.b16 %v601
    %v641 = vunpack.c.l.b16 %v602
    %v642 = vunpack.c.l.b16 %v603
    %v643 = vunpack.c.l.b16 %v604
    %v644 = vunpack.c.l.b16 %v605
    %v645 = vunpack.c.l.b16 %v606
    %v646 = vunpack.c.l.b16 %v607
    %v647 = vunpack.c.l.b16 %v608
    %v648 = vunpack.c.l.b16 %v609
    %v649 = vunpack.c.l.b16 %v610
    %v650 = vunpack.c.l.b16 %v611
    %v651 = vunpack.c.l.b16 %v612
    %v652 = vpack.c.b16 %v637, %v636
    %v653 = vpack.c.b16 %v639, %v638
    %v654 = vpack.c.b16 %v641, %v640
    %v655 = vpack.c.b16 %v643, %v642
    %v656 = vpack.c.b16 %v645, %v644
    %v657 = vpack.c.b16 %v647, %v646
    %v658 = vpack.c.b16 %v649, %v648
    %v659 = vpack.c.b16 %v651, %v650
    %668 = vmatprep.subr.bf16.mxu0 0
    %669 = vmatpush1.bf16.msra.mxu0 %v659
    %670 = vmatprep.subr.bf16.mxu0 0
    %671 = vmatpush1.bf16.msra.mxu0 %v658
    %672 = vmatprep.subr.bf16.mxu0 0
    %673 = vmatpush1.bf16.msra.mxu0 %v657
    %674 = vmatprep.subr.bf16.mxu0 0
    %675 = vmatpush1.bf16.msra.mxu0 %v656
    %676 = vmatprep.subr.bf16.mxu0 0
    %677 = vmatpush1.bf16.msra.mxu0 %v655
    %678 = vmatprep.subr.bf16.mxu0 0
    %679 = vmatpush1.bf16.msra.mxu0 %v654
    %680 = vmatprep.subr.bf16.mxu0 0
    %681 = vmatpush1.bf16.msra.mxu0 %v653
    %682 = vmatprep.subr.bf16.mxu0 0
    %683 = vmatpush1.bf16.msra.mxu0 %v652
    %684 = vmatprep.subr.bf16.mxu0 0
    %685 = vmatpush2.bf16.msra.mxu0 0
    %686 = vmatprep.subr.bf16.mxu0 0
    %687 = vmatpush2.bf16.msra.mxu0 0
    %688 = vmatprep.subr.bf16.mxu0 0
    %689 = vmatpush2.bf16.msra.mxu0 0
    %690 = vmatprep.subr.bf16.mxu0 0
    %691 = vmatpush2.bf16.msra.mxu0 0
    %692 = vmatprep.subr.bf16.mxu0 0
    %693 = vmatpush2.bf16.msra.mxu0 0
    %694 = vmatprep.subr.bf16.mxu0 0
    %695 = vmatpush2.bf16.msra.mxu0 0
    %696 = vmatprep.subr.bf16.mxu0 0
    %697 = vmatpush2.bf16.msra.mxu0 0
    %698 = vmatprep.subr.bf16.mxu0 0
    %699 = vmatpush2.bf16.msra.mxu0 0
    %700 = vmatprep.mubr.bf16.mxu0 0
    %701 = vmatmul.mubr.bf16.gmra.mxu0 %v453
    %v702 = vpop.f32.mrf.mxu0
    %v703 = vadd.f32 %v618, %v702
    %v704 = vpop.f32.mrf.mxu0
    %v705 = vpop.f32.mrf.mxu0
    %v706 = vadd.f32 %v618, %v705
    %v707 = vpop.f32.mrf.mxu0
    %708 = vdwg.mxu0
    %v709 = vmul.f32 %v703, %v703
    %v710 = vmul.f32 %v706, %v706
    %v711 = vmul.f32 %v703, %v709
    %v712 = vmul.f32 %v706, %v710
    %v713 = vmul.f32 %v711, 0.044715
    %v714 = vmul.f32 %v712, 0.044715
    %v715 = vadd.f32 %v703, %v713
    %v716 = vadd.f32 %v706, %v714
    %v717 = vmul.f32 %v715, 0.7978846
    %v718 = vmul.f32 %v716, 0.7978846
    %v719 = vtanh.pop %v717
    %v720 = vtanh.pop %v718
    %v721 = vadd.f32 %v719, 1.0
    %v722 = vadd.f32 %v720, 1.0
    %v723 = vmul.f32 %v721, 0.5
    %v724 = vmul.f32 %v722, 0.5
    %v725 = vmul.f32 %v703, %v723
    %v726 = vmul.f32 %v706, %v724
    %v727 = vpack.c.bf16 %v726, %v725
    %v729 = vunpack.c.l.b16 %v727
    %v730 = vunpack.c.h.b16 %v727
    %v731 = vpack.c.b16 %v729, %v729
    %v732 = vpack.c.b16 %v730, %v730
    %735 = vst [vmem:[%s5 + $0x4] sm:$0xf] %v731
    %736 = vst [vmem:[%s5 + $0x14] sm:$0xf] %v732
    %s737 = scalar_lea.vmem [#allocation6], 128
    %v738 = vld [vmem:[%s737] sm:$0xf]
    %v739 = vld [vmem:[%s737 + $0x4] sm:$0xf]
    %v740 = vld [vmem:[%s737 + $0x8] sm:$0xf]
    %v741 = vld [vmem:[%s737 + $0xc] sm:$0xf]
    %v742 = vld [vmem:[%s737 + $0x10] sm:$0xf]
    %v743 = vld [vmem:[%s737 + $0x14] sm:$0xf]
    %v744 = vld [vmem:[%s737 + $0x18] sm:$0xf]
    %v745 = vld [vmem:[%s737 + $0x1c] sm:$0xf]
    %v746 = vld [vmem:[%s737 + $0x20] sm:$0xf]
    %v747 = vld [vmem:[%s737 + $0x24] sm:$0xf]
    %v748 = vld [vmem:[%s737 + $0x28] sm:$0xf]
    %v749 = vld [vmem:[%s737 + $0x2c] sm:$0xf]
    %v750 = vld [vmem:[%s737 + $0x30] sm:$0xf]
    %v751 = vld [vmem:[%s737 + $0x34] sm:$0xf]
    %v752 = vld [vmem:[%s737 + $0x38] sm:$0xf]
    %v753 = vld [vmem:[%s737 + $0x3c] sm:$0xf]
    %v754 = vld [vmem:[#allocation7 + $0x2] sm:$0x1]
    %v756 = vlaneseq
    %v757 = vshrl.u32 %v756, 7
    %v758 = vsub.s32 0, %v757
    %v759 = vrot.slane %v754, %v758
    %v777 = vunpack.c.l.b16 %v738
    %v778 = vunpack.c.l.b16 %v739
    %v779 = vunpack.c.l.b16 %v740
    %v780 = vunpack.c.l.b16 %v741
    %v781 = vunpack.c.l.b16 %v742
    %v782 = vunpack.c.l.b16 %v743
    %v783 = vunpack.c.l.b16 %v744
    %v784 = vunpack.c.l.b16 %v745
    %v785 = vunpack.c.l.b16 %v746
    %v786 = vunpack.c.l.b16 %v747
    %v787 = vunpack.c.l.b16 %v748
    %v788 = vunpack.c.l.b16 %v749
    %v789 = vunpack.c.l.b16 %v750
    %v790 = vunpack.c.l.b16 %v751
    %v791 = vunpack.c.l.b16 %v752
    %v792 = vunpack.c.l.b16 %v753
    %v793 = vpack.c.b16 %v778, %v777
    %v794 = vpack.c.b16 %v780, %v779
    %v795 = vpack.c.b16 %v782, %v781
    %v796 = vpack.c.b16 %v784, %v783
    %v797 = vpack.c.b16 %v786, %v785
    %v798 = vpack.c.b16 %v788, %v787
    %v799 = vpack.c.b16 %v790, %v789
    %v800 = vpack.c.b16 %v792, %v791
    %809 = vmatprep.subr.bf16.mxu0 0
    %810 = vmatpush1.bf16.msra.mxu0 %v800
    %811 = vmatprep.subr.bf16.mxu0 0
    %812 = vmatpush1.bf16.msra.mxu0 %v799
    %813 = vmatprep.subr.bf16.mxu0 0
    %814 = vmatpush1.bf16.msra.mxu0 %v798
    %815 = vmatprep.subr.bf16.mxu0 0
    %816 = vmatpush1.bf16.msra.mxu0 %v797
    %817 = vmatprep.subr.bf16.mxu0 0
    %818 = vmatpush1.bf16.msra.mxu0 %v796
    %819 = vmatprep.subr.bf16.mxu0 0
    %820 = vmatpush1.bf16.msra.mxu0 %v795
    %821 = vmatprep.subr.bf16.mxu0 0
    %822 = vmatpush1.bf16.msra.mxu0 %v794
    %823 = vmatprep.subr.bf16.mxu0 0
    %824 = vmatpush1.bf16.msra.mxu0 %v793
    %825 = vmatprep.subr.bf16.mxu0 0
    %826 = vmatpush2.bf16.msra.mxu0 0
    %827 = vmatprep.subr.bf16.mxu0 0
    %828 = vmatpush2.bf16.msra.mxu0 0
    %829 = vmatprep.subr.bf16.mxu0 0
    %830 = vmatpush2.bf16.msra.mxu0 0
    %831 = vmatprep.subr.bf16.mxu0 0
    %832 = vmatpush2.bf16.msra.mxu0 0
    %833 = vmatprep.subr.bf16.mxu0 0
    %834 = vmatpush2.bf16.msra.mxu0 0
    %835 = vmatprep.subr.bf16.mxu0 0
    %836 = vmatpush2.bf16.msra.mxu0 0
    %837 = vmatprep.subr.bf16.mxu0 0
    %838 = vmatpush2.bf16.msra.mxu0 0
    %839 = vmatprep.subr.bf16.mxu0 0
    %840 = vmatpush2.bf16.msra.mxu0 0
    %841 = vmatprep.mubr.bf16.mxu0 0
    %842 = vmatmul.mubr.bf16.gmra.mxu0 %v454
    %v843 = vpop.f32.mrf.mxu0
    %v844 = vadd.f32 %v759, %v843
    %v845 = vpop.f32.mrf.mxu0
    %v846 = vpop.f32.mrf.mxu0
    %v847 = vadd.f32 %v759, %v846
    %v848 = vpop.f32.mrf.mxu0
    %849 = vdwg.mxu0
    %v850 = vmul.f32 %v844, %v844
    %v851 = vmul.f32 %v847, %v847
    %v852 = vmul.f32 %v844, %v850
    %v853 = vmul.f32 %v847, %v851
    %v854 = vmul.f32 %v852, 0.044715
    %v855 = vmul.f32 %v853, 0.044715
    %v856 = vadd.f32 %v844, %v854
    %v857 = vadd.f32 %v847, %v855
    %v858 = vmul.f32 %v856, 0.7978846
    %v859 = vmul.f32 %v857, 0.7978846
    %v860 = vtanh.pop %v858
    %v861 = vtanh.pop %v859
    %v862 = vadd.f32 %v860, 1.0
    %v863 = vadd.f32 %v861, 1.0
    %v864 = vmul.f32 %v862, 0.5
    %v865 = vmul.f32 %v863, 0.5
    %v866 = vmul.f32 %v844, %v864
    %v867 = vmul.f32 %v847, %v865
    %v868 = vpack.c.bf16 %v867, %v866
    %v870 = vunpack.c.l.b16 %v868
    %v871 = vunpack.c.h.b16 %v868
    %v872 = vpack.c.b16 %v870, %v870
    %v873 = vpack.c.b16 %v871, %v871
    %876 = vst [vmem:[%s5 + $0x8] sm:$0xf] %v872
    %877 = vst [vmem:[%s5 + $0x18] sm:$0xf] %v873
    %s878 = scalar_lea.vmem [#allocation6], 192
    %v879 = vld [vmem:[%s878] sm:$0xf]
    %v880 = vld [vmem:[%s878 + $0x4] sm:$0xf]
    %v881 = vld [vmem:[%s878 + $0x8] sm:$0xf]
    %v882 = vld [vmem:[%s878 + $0xc] sm:$0xf]
    %v883 = vld [vmem:[%s878 + $0x10] sm:$0xf]
    %v884 = vld [vmem:[%s878 + $0x14] sm:$0xf]
    %v885 = vld [vmem:[%s878 + $0x18] sm:$0xf]
    %v886 = vld [vmem:[%s878 + $0x1c] sm:$0xf]
    %v887 = vld [vmem:[%s878 + $0x20] sm:$0xf]
    %v888 = vld [vmem:[%s878 + $0x24] sm:$0xf]
    %v889 = vld [vmem:[%s878 + $0x28] sm:$0xf]
    %v890 = vld [vmem:[%s878 + $0x2c] sm:$0xf]
    %v891 = vld [vmem:[%s878 + $0x30] sm:$0xf]
    %v892 = vld [vmem:[%s878 + $0x34] sm:$0xf]
    %v893 = vld [vmem:[%s878 + $0x38] sm:$0xf]
    %v894 = vld [vmem:[%s878 + $0x3c] sm:$0xf]
    %v895 = vld [vmem:[#allocation7 + $0x3] sm:$0x1]
    %v897 = vlaneseq
    %v898 = vshrl.u32 %v897, 7
    %v899 = vsub.s32 0, %v898
    %v900 = vrot.slane %v895, %v899
    %v918 = vunpack.c.l.b16 %v879
    %v919 = vunpack.c.l.b16 %v880
    %v920 = vunpack.c.l.b16 %v881
    %v921 = vunpack.c.l.b16 %v882
    %v922 = vunpack.c.l.b16 %v883
    %v923 = vunpack.c.l.b16 %v884
    %v924 = vunpack.c.l.b16 %v885
    %v925 = vunpack.c.l.b16 %v886
    %v926 = vunpack.c.l.b16 %v887
    %v927 = vunpack.c.l.b16 %v888
    %v928 = vunpack.c.l.b16 %v889
    %v929 = vunpack.c.l.b16 %v890
    %v930 = vunpack.c.l.b16 %v891
    %v931 = vunpack.c.l.b16 %v892
    %v932 = vunpack.c.l.b16 %v893
    %v933 = vunpack.c.l.b16 %v894
    %v934 = vpack.c.b16 %v919, %v918
    %v935 = vpack.c.b16 %v921, %v920
    %v936 = vpack.c.b16 %v923, %v922
    %v937 = vpack.c.b16 %v925, %v924
    %v938 = vpack.c.b16 %v927, %v926
    %v939 = vpack.c.b16 %v929, %v928
    %v940 = vpack.c.b16 %v931, %v930
    %v941 = vpack.c.b16 %v933, %v932
    %950 = vmatprep.subr.bf16.mxu0 0
    %951 = vmatpush1.bf16.msra.mxu0 %v941
    %952 = vmatprep.subr.bf16.mxu0 0
    %953 = vmatpush1.bf16.msra.mxu0 %v940
    %954 = vmatprep.subr.bf16.mxu0 0
    %955 = vmatpush1.bf16.msra.mxu0 %v939
    %956 = vmatprep.subr.bf16.mxu0 0
    %957 = vmatpush1.bf16.msra.mxu0 %v938
    %958 = vmatprep.subr.bf16.mxu0 0
    %959 = vmatpush1.bf16.msra.mxu0 %v937
    %960 = vmatprep.subr.bf16.mxu0 0
    %961 = vmatpush1.bf16.msra.mxu0 %v936
    %962 = vmatprep.subr.bf16.mxu0 0
    %963 = vmatpush1.bf16.msra.mxu0 %v935
    %964 = vmatprep.subr.bf16.mxu0 0
    %965 = vmatpush1.bf16.msra.mxu0 %v934
    %966 = vmatprep.subr.bf16.mxu0 0
    %967 = vmatpush2.bf16.msra.mxu0 0
    %968 = vmatprep.subr.bf16.mxu0 0
    %969 = vmatpush2.bf16.msra.mxu0 0
    %970 = vmatprep.subr.bf16.mxu0 0
    %971 = vmatpush2.bf16.msra.mxu0 0
    %972 = vmatprep.subr.bf16.mxu0 0
    %973 = vmatpush2.bf16.msra.mxu0 0
    %974 = vmatprep.subr.bf16.mxu0 0
    %975 = vmatpush2.bf16.msra.mxu0 0
    %976 = vmatprep.subr.bf16.mxu0 0
    %977 = vmatpush2.bf16.msra.mxu0 0
    %978 = vmatprep.subr.bf16.mxu0 0
    %979 = vmatpush2.bf16.msra.mxu0 0
    %980 = vmatprep.subr.bf16.mxu0 0
    %981 = vmatpush2.bf16.msra.mxu0 0
    %982 = vmatprep.mubr.bf16.mxu0 0
    %983 = vmatmul.mubr.bf16.gmra.mxu0 %v455
    %v984 = vpop.f32.mrf.mxu0
    %v985 = vadd.f32 %v900, %v984
    %v986 = vpop.f32.mrf.mxu0
    %v987 = vpop.f32.mrf.mxu0
    %v988 = vadd.f32 %v900, %v987
    %v989 = vpop.f32.mrf.mxu0
    %990 = vdwg.mxu0
    %v991 = vmul.f32 %v985, %v985
    %v992 = vmul.f32 %v988, %v988
    %v993 = vmul.f32 %v985, %v991
    %v994 = vmul.f32 %v988, %v992
    %v995 = vmul.f32 %v993, 0.044715
    %v996 = vmul.f32 %v994, 0.044715
    %v997 = vadd.f32 %v985, %v995
    %v998 = vadd.f32 %v988, %v996
    %v999 = vmul.f32 %v997, 0.7978846
    %v1000 = vmul.f32 %v998, 0.7978846
    %v1001 = vtanh.pop %v999
    %v1002 = vtanh.pop %v1000
    %v1003 = vadd.f32 %v1001, 1.0
    %v1004 = vadd.f32 %v1002, 1.0
    %v1005 = vmul.f32 %v1003, 0.5
    %v1006 = vmul.f32 %v1004, 0.5
    %v1007 = vmul.f32 %v985, %v1005
    %v1008 = vmul.f32 %v988, %v1006
    %v1009 = vpack.c.bf16 %v1008, %v1007
    %v1011 = vunpack.c.l.b16 %v1009
    %v1012 = vunpack.c.h.b16 %v1009
    %v1013 = vpack.c.b16 %v1011, %v1011
    %v1014 = vpack.c.b16 %v1012, %v1012
    %1017 = vst [vmem:[%s5 + $0xc] sm:$0xf] %v1013
    %1018 = vst [vmem:[%s5 + $0x1c] sm:$0xf] %v1014
    // Predicated region
    $region38: #{camembert_for_parsing_forward.3} parent=1 // pred_check
      _
    $region39: #{camembert_for_parsing_forward.3} parent=1 // pred_check_branch
      %1020 = sbr.rel (0) target = $region41
    $region40: #{camembert_for_parsing_forward.3} parent=1 // pred_region
      _
    $region41: #{camembert_for_parsing_forward.3} parent=1 // pred_fallthru
      _
    // Predicated region
    $region42: #{camembert_for_parsing_forward.3} parent=1 // pred_check
      _
    $region43: #{camembert_for_parsing_forward.3} parent=1 // pred_check_branch
      %1022 = sbr.rel (0) target = $region45
    $region44: #{camembert_for_parsing_forward.3} parent=1 // pred_region
      _
    $region45: #{camembert_for_parsing_forward.3} parent=1 // pred_fallthru
      _
    %1023 = vsyncpa [#allocation3], 1
    %1024 = vsyncpa [#allocation5], 1
    %1025 = vsyncpa [#allocation8], 1

// kernel: camembert_for_parsing_forward.5
$region0: #{camembert_for_parsing_forward.5}
  #allocation0 [shape = 'u32[]', space=smem, size = 0x4, offset = 0x4, fixed_abs, tag = 'smem constant byte address 0x4 - core index']
  #allocation1 [shape = 'u32[144,128]{1,0:T(1,128)}', space=vmem, size = 0x12000, scoped, tag = 'internal scratch']
  %s0 = inlined_call_operand.vmem [shape: bf16[16,512], index: 0, kind: input, shape index: {}, may-alias: {0,2}]
  %s1 = inlined_call_operand.vmem [shape: bf16[128,1024], index: 1, kind: input, shape index: {}]
  %s2 = inlined_call_operand.vmem [shape: bf16[16,512], index: 2, kind: input, shape index: {}, may-alias: {0,2}]
  %s3 = inlined_call_operand.hbm [shape: f32[2,8,8,8], index: 3, kind: output, shape index: {}]
  %s4 = sld [smem:[#allocation0]]
  $region45: #{camembert_for_parsing_forward.5} parent=0
    _
  %s6 = ssub.s32 1, %s4
  %s7 = scalar_select 0, %s6, %s4
  $region1: #{camembert_for_parsing_forward.5} parent=0
    #allocation2 [shape = 'u8[65536]{0}', space=vmem, size = 0x10000, scoped, tag = 'output window, operand 0']
    #allocation3 [shape = 's32[2]{0}', space=sflag, size = 0x8, scoped, tag = 'scoped memory for camembert_for_parsing_forward.5']
    %8 = vsyncpa [#allocation3], 0
    %s9 = scalar_lea.sflag [#allocation3], 1
    %10 = vsyncpa %s9, 0
    loop: start=0, step=1, limit=4
    $region2: #{camembert_for_parsing_forward.5} parent=1 // loop_pre_header
      _
    $region3: #{camembert_for_parsing_forward.5} parent=1 // loop_header
      %s12 = sphi 0, %s16
      %p13 = scmp.ge.s32.totalorder %s12, 4
      %s19 = sphi 0, %s31
      %s20 = sphi 0, %s27
      %s21 = sphi 0, %s19
      %s22 = sphi 0, %s20
      %s23 = sphi 0, %s21
      %s24 = sphi 0, %s22
      %s34 = sphi 0, %s36
      %s37 = sphi 0, %s34
      %s38 = sphi 0, %s37
      %s54 = sphi 0, %s38
      %s60 = sphi 0, %s62
      %s63 = sphi 0, %s60
      %s64 = sphi 0, %s63
      %s80 = sphi 0, %s64
      %s86 = sphi 0, %s88
      %s89 = sphi 0, %s86
      %s90 = sphi 0, %s89
      %s106 = sphi 0, %s90
      %s114 = sphi 0, %s116
      %s117 = sphi 0, %s114
      %s118 = sphi 0, %s117
      %s134 = sphi 0, %s118
    $region4: #{camembert_for_parsing_forward.5} parent=1 // loop_header_branch
      %15 = sbr.rel (%p13) target = $region8
    $region5: #{camembert_for_parsing_forward.5} parent=1 // loop_body
      %s17 = ssub.s32 %s12, 1
      %s18 = ssub.s32 %s12, 2
      %s25 = sadd.s32 1, %s20
      %p26 = scmp.ge.s32.totalorder %s25, 1
      %s27 = scalar_select %p26, 0, %s25
      %s28 = sadd.s32 1, %s19
      %s29 = scalar_select %p26, %s28, %s19
      %p30 = scmp.ge.s32.totalorder %s29, 2
      %s31 = scalar_select %p30, 0, %s29
      %s32 = ssub.s32 %s19, %s31
      %p33 = scmp.eq.s32.totalorder %s32, 0
      %s35 = sadd.s32 %s34, 1
      %s36 = scalar_select %p33, %s34, %s35
      %p39 = pneg %p33
      %p40 = scmp.eq.s32.totalorder %s12, 1
      %p41 = por %p39, %p40
      %p42 = scmp.ne.s32.totalorder %s34, %s37
      %p43 = scmp.eq.s32.totalorder %s12, 0
      %p44 = por %p42, %p43
      %p45 = scmp.ne.s32.totalorder %s34, %s37
      %p46 = scmp.eq.s32.totalorder %s17, 1
      %p47 = por %p45, %p46
      %p48 = scmp.ne.s32.totalorder %s37, %s38
      %p49 = scmp.eq.s32.totalorder %s17, 0
      %p50 = por %p48, %p49
      %p51 = scmp.ne.s32.totalorder %s37, %s38
      %p52 = scmp.eq.s32.totalorder %s18, 1
      %p53 = por %p51, %p52
      %p55 = scmp.ne.s32.totalorder %s38, %s54
      %p56 = scmp.eq.s32.totalorder %s18, 0
      %p57 = por %p55, %p56
      %s58 = ssub.s32 %s20, %s27
      %p59 = scmp.eq.s32.totalorder %s58, 0
      %s61 = sadd.s32 %s60, 1
      %s62 = scalar_select %p59, %s60, %s61
      %p65 = pneg %p59
      %p66 = scmp.eq.s32.totalorder %s12, 1
      %p67 = por %p65, %p66
      %p68 = scmp.ne.s32.totalorder %s60, %s63
      %p69 = scmp.eq.s32.totalorder %s12, 0
      %p70 = por %p68, %p69
      %p71 = scmp.ne.s32.totalorder %s60, %s63
      %p72 = scmp.eq.s32.totalorder %s17, 1
      %p73 = por %p71, %p72
      %p74 = scmp.ne.s32.totalorder %s63, %s64
      %p75 = scmp.eq.s32.totalorder %s17, 0
      %p76 = por %p74, %p75
      %p77 = scmp.ne.s32.totalorder %s63, %s64
      %p78 = scmp.eq.s32.totalorder %s18, 1
      %p79 = por %p77, %p78
      %p81 = scmp.ne.s32.totalorder %s64, %s80
      %p82 = scmp.eq.s32.totalorder %s18, 0
      %p83 = por %p81, %p82
      %s84 = ssub.s32 %s19, %s31
      %p85 = scmp.eq.s32.totalorder %s84, 0
      %s87 = sadd.s32 %s86, 1
      %s88 = scalar_select %p85, %s86, %s87
      %p91 = pneg %p85
      %p92 = scmp.eq.s32.totalorder %s12, 1
      %p93 = por %p91, %p92
      %p94 = scmp.ne.s32.totalorder %s86, %s89
      %p95 = scmp.eq.s32.totalorder %s12, 0
      %p96 = por %p94, %p95
      %p97 = scmp.ne.s32.totalorder %s86, %s89
      %p98 = scmp.eq.s32.totalorder %s17, 1
      %p99 = por %p97, %p98
      %p100 = scmp.ne.s32.totalorder %s89, %s90
      %p101 = scmp.eq.s32.totalorder %s17, 0
      %p102 = por %p100, %p101
      %p103 = scmp.ne.s32.totalorder %s89, %s90
      %p104 = scmp.eq.s32.totalorder %s18, 1
      %p105 = por %p103, %p104
      %p107 = scmp.ne.s32.totalorder %s90, %s106
      %p108 = scmp.eq.s32.totalorder %s18, 0
      %p109 = por %p107, %p108
      %s110 = ssub.s32 %s19, %s31
      %s111 = ssub.s32 %s20, %s27
      %s112 = sor.u32 %s110, %s111
      %p113 = scmp.eq.s32.totalorder %s112, 0
      %s115 = sadd.s32 %s114, 1
      %s116 = scalar_select %p113, %s114, %s115
      %p119 = pneg %p113
      %p120 = scmp.eq.s32.totalorder %s12, 1
      %p121 = por %p119, %p120
      %p122 = scmp.ne.s32.totalorder %s114, %s117
      %p123 = scmp.eq.s32.totalorder %s12, 0
      %p124 = por %p122, %p123
      %p125 = scmp.ne.s32.totalorder %s114, %s117
      %p126 = scmp.eq.s32.totalorder %s17, 1
      %p127 = por %p125, %p126
      %p128 = scmp.ne.s32.totalorder %s117, %s118
      %p129 = scmp.eq.s32.totalorder %s17, 0
      %p130 = por %p128, %p129
      %p131 = scmp.ne.s32.totalorder %s117, %s118
      %p132 = scmp.eq.s32.totalorder %s18, 1
      %p133 = por %p131, %p132
      %p135 = scmp.ne.s32.totalorder %s118, %s134
      %p136 = scmp.eq.s32.totalorder %s18, 0
      %p137 = por %p135, %p136
      %p138 = scmp.le.s32.totalorder 1, %s12
      %p139 = scmp.lt.s32.totalorder %s12, 3
      %p140 = pnand %p138, %p139
      %p141 = pneg %p140
      // Predicated region
      $region9: #{camembert_for_parsing_forward.5} parent=5 // pred_check
        _
      $region10: #{camembert_for_parsing_forward.5} parent=5 // pred_check_branch
        %143 = sbr.rel (%p140) target = $region12
      $region11: #{camembert_for_parsing_forward.5} parent=5 // pred_region
        %s144 = ssub.s32 %s12, 1
        // Predicated region
        $region13: #{camembert_for_parsing_forward.5} parent=11 // pred_check
          %p145 = pneg %p76
        $region14: #{camembert_for_parsing_forward.5} parent=11 // pred_check_branch
          %147 = sbr.rel (%p145) target = $region16
        $region15: #{camembert_for_parsing_forward.5} parent=11 // pred_region
          %s148 = smul.u32 8, %s22
          %p149 = scmp.lt.s32.totalorder %s148, 7
          %s150 = scalar_select %p149, %s148, 7
          %s151 = smul.addr %s150, 4
          %s152 = scalar_lea.vmem %s1, %s151
          %s153 = smul.u32 8, %s22
        $region16: #{camembert_for_parsing_forward.5} parent=11 // pred_fallthru
          _
      $region12: #{camembert_for_parsing_forward.5} parent=5 // pred_fallthru
        _
      %p154 = scmp.lt.s32.totalorder %s12, 2
      // Predicated region
      $region17: #{camembert_for_parsing_forward.5} parent=5 // pred_check
        %p155 = pneg %p154
      $region18: #{camembert_for_parsing_forward.5} parent=5 // pred_check_branch
        %157 = sbr.rel (%p155) target = $region20
      $region19: #{camembert_for_parsing_forward.5} parent=5 // pred_region
        // Predicated region
        $region21: #{camembert_for_parsing_forward.5} parent=19 // pred_check
          %p158 = pneg %p44
        $region22: #{camembert_for_parsing_forward.5} parent=19 // pred_check_branch
          %160 = sbr.rel (%p158) target = $region24
        $region23: #{camembert_for_parsing_forward.5} parent=19 // pred_region
          %p161 = scmp.lt.s32.totalorder %s19, 1
          %s162 = scalar_select %p161, %s19, 1
          %s163 = smul.addr %s162, 4
          %s164 = sadd.s32 2, %s163
          %s165 = smul.addr %s164, 4
          %s166 = scalar_lea.vmem %s0, %s165
        $region24: #{camembert_for_parsing_forward.5} parent=19 // pred_fallthru
          _
        // Predicated region
        $region25: #{camembert_for_parsing_forward.5} parent=19 // pred_check
          %p167 = pneg %p96
        $region26: #{camembert_for_parsing_forward.5} parent=19 // pred_check_branch
          %169 = sbr.rel (%p167) target = $region28
        $region27: #{camembert_for_parsing_forward.5} parent=19 // pred_region
          %p170 = scmp.lt.s32.totalorder %s19, 1
          %s171 = scalar_select %p170, %s19, 1
          %s172 = smul.addr %s171, 4
          %s173 = sadd.s32 3, %s172
          %s174 = smul.addr %s173, 4
          %s175 = scalar_lea.vmem %s2, %s174
        $region28: #{camembert_for_parsing_forward.5} parent=19 // pred_fallthru
          _
      $region20: #{camembert_for_parsing_forward.5} parent=5 // pred_fallthru
        _
      %p176 = scmp.le.s32.totalorder 1, %s12
      %p177 = scmp.lt.s32.totalorder %s12, 3
      %p178 = pnand %p176, %p177
      %p179 = pneg %p178
      // Predicated region
      $region29: #{camembert_for_parsing_forward.5} parent=5 // pred_check
        _
      $region30: #{camembert_for_parsing_forward.5} parent=5 // pred_check_branch
        %181 = sbr.rel (%p178) target = $region32
      $region31: #{camembert_for_parsing_forward.5} parent=5 // pred_region
        %s182 = ssub.s32 %s12, 1
        %p183 = scmp.lt.s32.totalorder %s21, 1
        %s184 = scalar_select %p183, %s21, 1
        %s185 = smul.addr %s184, 4
        %s186 = sadd.s32 2, %s185
        %s187 = smul.addr %s186, 4
        %s188 = scalar_lea.vmem %s0, %s187
        %p189 = pneg %p50
        %p190 = pneg %p47
        %s191 = smul.u32 8, %s22
        %p192 = scmp.lt.s32.totalorder %s191, 7
        %s193 = scalar_select %p192, %s191, 7
        %s194 = smul.addr %s193, 4
        %s195 = scalar_lea.vmem %s1, %s194
        %p196 = pneg %p76
        %p197 = pneg %p73
        %p198 = scmp.lt.s32.totalorder %s21, 1
        %s199 = scalar_select %p198, %s21, 1
        %s200 = smul.addr %s199, 4
        %s201 = sadd.s32 3, %s200
        %s202 = smul.addr %s201, 4
        %s203 = scalar_lea.vmem %s2, %s202
        %p204 = pneg %p102
        %p205 = pneg %p99
        %p206 = pneg %p130
        %p207 = pneg %p127
        %s208 = sand.u32 %s117, 1
        %s209 = scalar_lea.sflag [#allocation3], %s208
        %s210 = sand.u32 %s117, 1
        %s211 = smul.addr %s210, 64
        %s212 = scalar_lea.vmem [#allocation2], %s211
        %p213 = scmp.lt.s32.totalorder %s21, 1
        %s214 = scalar_select %p213, %s21, 1
        %s215 = smul.addr %s214, 4
        %s216 = sadd.s32 2, %s215
        %s217 = smul.addr %s216, 4
        %s218 = scalar_lea.vmem %s0, %s217
        %s219 = smul.u32 8, %s22
        %p220 = scmp.lt.s32.totalorder %s219, 7
        %s221 = scalar_select %p220, %s219, 7
        %s222 = smul.addr %s221, 4
        %s223 = scalar_lea.vmem %s1, %s222
        %s224 = smul.u32 8, %s22
        %p225 = scmp.lt.s32.totalorder %s21, 1
        %s226 = scalar_select %p225, %s21, 1
        %s227 = smul.addr %s226, 4
        %s228 = sadd.s32 3, %s227
        %s229 = smul.addr %s228, 4
        %s230 = scalar_lea.vmem %s2, %s229
        %s231 = smul.u32 8, %s22
        %v234 = vlaneseq
        %v235 = vand.u32 %v234, 127
        %vm236 = vcmp.eq.s32.totalorder %v235, 32
        %v237 = vld [vmem:[%s218] sm:$0xf]
        %vm238 = vmpackc.low %vm236, %vm236
        %v239 = vsel %vm238, 1065369472, %v237
        %v240 = vld [vmem:[%s230] sm:$0xf]
        %v241 = vsel %vm238, 1065369472, %v240
        %v242 = vld [vmem:[%s223] sm:$0xff]
        %v243 = vld [vmem:[%s223 + $0x8] sm:$0xff]
        %v244 = vld [vmem:[%s223 + $0x10] sm:$0xff]
        %v245 = vld [vmem:[%s223 + $0x18] sm:$0xff]
        %v246 = vld [vmem:[%s223 + $0x20] sm:$0xff]
        %v247 = vld [vmem:[%s223 + $0x28] sm:$0xff]
        %v248 = vld [vmem:[%s223 + $0x30] sm:$0xff]
        %v249 = vld [vmem:[%s223 + $0x38] sm:$0xff]
        %v250 = vld [vmem:[%s223 + $0x40] sm:$0xff]
        %v251 = vld [vmem:[%s223 + $0x48] sm:$0xff]
        %v252 = vld [vmem:[%s223 + $0x50] sm:$0xff]
        %v253 = vld [vmem:[%s223 + $0x58] sm:$0xff]
        %v254 = vld [vmem:[%s223 + $0x60] sm:$0xff]
        %v255 = vld [vmem:[%s223 + $0x68] sm:$0xff]
        %v256 = vld [vmem:[%s223 + $0x70] sm:$0xff]
        %v257 = vld [vmem:[%s223 + $0x78] sm:$0xff]
        %v258 = vld [vmem:[%s223 + $0x80] sm:$0xff]
        %v259 = vld [vmem:[%s223 + $0x88] sm:$0xff]
        %v260 = vld [vmem:[%s223 + $0x90] sm:$0xff]
        %v261 = vld [vmem:[%s223 + $0x98] sm:$0xff]
        %v262 = vld [vmem:[%s223 + $0xa0] sm:$0xff]
        %v263 = vld [vmem:[%s223 + $0xa8] sm:$0xff]
        %v264 = vld [vmem:[%s223 + $0xb0] sm:$0xff]
        %v265 = vld [vmem:[%s223 + $0xb8] sm:$0xff]
        %v266 = vld [vmem:[%s223 + $0xc0] sm:$0xff]
        %v267 = vld [vmem:[%s223 + $0xc8] sm:$0xff]
        %v268 = vld [vmem:[%s223 + $0xd0] sm:$0xff]
        %v269 = vld [vmem:[%s223 + $0xd8] sm:$0xff]
        %v270 = vld [vmem:[%s223 + $0xe0] sm:$0xff]
        %v271 = vld [vmem:[%s223 + $0xe8] sm:$0xff]
        %v272 = vld [vmem:[%s223 + $0xf0] sm:$0xff]
        %v273 = vld [vmem:[%s223 + $0xf8] sm:$0xff]
        %v274 = vld [vmem:[%s223 + $0x100] sm:$0xff]
        %v275 = vld [vmem:[%s223 + $0x108] sm:$0xff]
        %v276 = vld [vmem:[%s223 + $0x110] sm:$0xff]
        %v277 = vld [vmem:[%s223 + $0x118] sm:$0xff]
        %v278 = vld [vmem:[%s223 + $0x120] sm:$0xff]
        %v279 = vld [vmem:[%s223 + $0x128] sm:$0xff]
        %v280 = vld [vmem:[%s223 + $0x130] sm:$0xff]
        %v281 = vld [vmem:[%s223 + $0x138] sm:$0xff]
        %v282 = vld [vmem:[%s223 + $0x140] sm:$0xff]
        %v283 = vld [vmem:[%s223 + $0x148] sm:$0xff]
        %v284 = vld [vmem:[%s223 + $0x150] sm:$0xff]
        %v285 = vld [vmem:[%s223 + $0x158] sm:$0xff]
        %v286 = vld [vmem:[%s223 + $0x160] sm:$0xff]
        %v287 = vld [vmem:[%s223 + $0x168] sm:$0xff]
        %v288 = vld [vmem:[%s223 + $0x170] sm:$0xff]
        %v289 = vld [vmem:[%s223 + $0x178] sm:$0xff]
        %v290 = vld [vmem:[%s223 + $0x180] sm:$0xff]
        %v291 = vld [vmem:[%s223 + $0x188] sm:$0xff]
        %v292 = vld [vmem:[%s223 + $0x190] sm:$0xff]
        %v293 = vld [vmem:[%s223 + $0x198] sm:$0xff]
        %v294 = vld [vmem:[%s223 + $0x1a0] sm:$0xff]
        %v295 = vld [vmem:[%s223 + $0x1a8] sm:$0xff]
        %v296 = vld [vmem:[%s223 + $0x1b0] sm:$0xff]
        %v297 = vld [vmem:[%s223 + $0x1b8] sm:$0xff]
        %v298 = vld [vmem:[%s223 + $0x1c0] sm:$0xff]
        %v299 = vld [vmem:[%s223 + $0x1c8] sm:$0xff]
        %v300 = vld [vmem:[%s223 + $0x1d0] sm:$0xff]
        %v301 = vld [vmem:[%s223 + $0x1d8] sm:$0xff]
        %v302 = vld [vmem:[%s223 + $0x1e0] sm:$0xff]
        %v303 = vld [vmem:[%s223 + $0x1e8] sm:$0xff]
        %v304 = vld [vmem:[%s223 + $0x1f0] sm:$0xff]
        %v305 = vld [vmem:[%s223 + $0x1f8] sm:$0xff]
        %v370 = vunpack.c.l.b16 %v242
        %v371 = vunpack.c.h.b16 %v242
        %v372 = vunpack.c.l.b16 %v243
        %v373 = vunpack.c.h.b16 %v243
        %v374 = vunpack.c.l.b16 %v244
        %v375 = vunpack.c.h.b16 %v244
        %v376 = vunpack.c.l.b16 %v245
        %v377 = vunpack.c.h.b16 %v245
        %v378 = vunpack.c.l.b16 %v246
        %v379 = vunpack.c.h.b16 %v246
        %v380 = vunpack.c.l.b16 %v247
        %v381 = vunpack.c.h.b16 %v247
        %v382 = vunpack.c.l.b16 %v248
        %v383 = vunpack.c.h.b16 %v248
        %v384 = vunpack.c.l.b16 %v249
        %v385 = vunpack.c.h.b16 %v249
        %v386 = vunpack.c.l.b16 %v250
        %v387 = vunpack.c.h.b16 %v250
        %v388 = vunpack.c.l.b16 %v251
        %v389 = vunpack.c.h.b16 %v251
        %v390 = vunpack.c.l.b16 %v252
        %v391 = vunpack.c.h.b16 %v252
        %v392 = vunpack.c.l.b16 %v253
        %v393 = vunpack.c.h.b16 %v253
        %v394 = vunpack.c.l.b16 %v254
        %v395 = vunpack.c.h.b16 %v254
        %v396 = vunpack.c.l.b16 %v255
        %v397 = vunpack.c.h.b16 %v255
        %v398 = vunpack.c.l.b16 %v256
        %v399 = vunpack.c.h.b16 %v256
        %v400 = vunpack.c.l.b16 %v257
        %v401 = vunpack.c.h.b16 %v257
        %v402 = vunpack.c.l.b16 %v258
        %v403 = vunpack.c.h.b16 %v258
        %v404 = vunpack.c.l.b16 %v259
        %v405 = vunpack.c.h.b16 %v259
        %v406 = vunpack.c.l.b16 %v260
        %v407 = vunpack.c.h.b16 %v260
        %v408 = vunpack.c.l.b16 %v261
        %v409 = vunpack.c.h.b16 %v261
        %v410 = vunpack.c.l.b16 %v262
        %v411 = vunpack.c.h.b16 %v262
        %v412 = vunpack.c.l.b16 %v263
        %v413 = vunpack.c.h.b16 %v263
        %v414 = vunpack.c.l.b16 %v264
        %v415 = vunpack.c.h.b16 %v264
        %v416 = vunpack.c.l.b16 %v265
        %v417 = vunpack.c.h.b16 %v265
        %v418 = vunpack.c.l.b16 %v266
        %v419 = vunpack.c.h.b16 %v266
        %v420 = vunpack.c.l.b16 %v267
        %v421 = vunpack.c.h.b16 %v267
        %v422 = vunpack.c.l.b16 %v268
        %v423 = vunpack.c.h.b16 %v268
        %v424 = vunpack.c.l.b16 %v269
        %v425 = vunpack.c.h.b16 %v269
        %v426 = vunpack.c.l.b16 %v270
        %v427 = vunpack.c.h.b16 %v270
        %v428 = vunpack.c.l.b16 %v271
        %v429 = vunpack.c.h.b16 %v271
        %v430 = vunpack.c.l.b16 %v272
        %v431 = vunpack.c.h.b16 %v272
        %v432 = vunpack.c.l.b16 %v273
        %v433 = vunpack.c.h.b16 %v273
        %v434 = vunpack.c.l.b16 %v274
        %v435 = vunpack.c.h.b16 %v274
        %v436 = vunpack.c.l.b16 %v275
        %v437 = vunpack.c.h.b16 %v275
        %v438 = vunpack.c.l.b16 %v276
        %v439 = vunpack.c.h.b16 %v276
        %v440 = vunpack.c.l.b16 %v277
        %v441 = vunpack.c.h.b16 %v277
        %v442 = vunpack.c.l.b16 %v278
        %v443 = vunpack.c.h.b16 %v278
        %v444 = vunpack.c.l.b16 %v279
        %v445 = vunpack.c.h.b16 %v279
        %v446 = vunpack.c.l.b16 %v280
        %v447 = vunpack.c.h.b16 %v280
        %v448 = vunpack.c.l.b16 %v281
        %v449 = vunpack.c.h.b16 %v281
        %v450 = vunpack.c.l.b16 %v282
        %v451 = vunpack.c.h.b16 %v282
        %v452 = vunpack.c.l.b16 %v283
        %v453 = vunpack.c.h.b16 %v283
        %v454 = vunpack.c.l.b16 %v284
        %v455 = vunpack.c.h.b16 %v284
        %v456 = vunpack.c.l.b16 %v285
        %v457 = vunpack.c.h.b16 %v285
        %v458 = vunpack.c.l.b16 %v286
        %v459 = vunpack.c.h.b16 %v286
        %v460 = vunpack.c.l.b16 %v287
        %v461 = vunpack.c.h.b16 %v287
        %v462 = vunpack.c.l.b16 %v288
        %v463 = vunpack.c.h.b16 %v288
        %v464 = vunpack.c.l.b16 %v289
        %v465 = vunpack.c.h.b16 %v289
        %v466 = vunpack.c.l.b16 %v290
        %v467 = vunpack.c.h.b16 %v290
        %v468 = vunpack.c.l.b16 %v291
        %v469 = vunpack.c.h.b16 %v291
        %v470 = vunpack.c.l.b16 %v292
        %v471 = vunpack.c.h.b16 %v292
        %v472 = vunpack.c.l.b16 %v293
        %v473 = vunpack.c.h.b16 %v293
        %v474 = vunpack.c.l.b16 %v294
        %v475 = vunpack.c.h.b16 %v294
        %v476 = vunpack.c.l.b16 %v295
        %v477 = vunpack.c.h.b16 %v295
        %v478 = vunpack.c.l.b16 %v296
        %v479 = vunpack.c.h.b16 %v296
        %v480 = vunpack.c.l.b16 %v297
        %v481 = vunpack.c.h.b16 %v297
        %v482 = vunpack.c.l.b16 %v298
        %v483 = vunpack.c.h.b16 %v298
        %v484 = vunpack.c.l.b16 %v299
        %v485 = vunpack.c.h.b16 %v299
        %v486 = vunpack.c.l.b16 %v300
        %v487 = vunpack.c.h.b16 %v300
        %v488 = vunpack.c.l.b16 %v301
        %v489 = vunpack.c.h.b16 %v301
        %v490 = vunpack.c.l.b16 %v302
        %v491 = vunpack.c.h.b16 %v302
        %v492 = vunpack.c.l.b16 %v303
        %v493 = vunpack.c.h.b16 %v303
        %v494 = vunpack.c.l.b16 %v304
        %v495 = vunpack.c.h.b16 %v304
        %v496 = vunpack.c.l.b16 %v305
        %v497 = vunpack.c.h.b16 %v305
        %v498 = vpack.c.b16 %v378, %v370
        %v499 = vpack.c.b16 %v379, %v371
        %v500 = vpack.c.b16 %v380, %v372
        %v501 = vpack.c.b16 %v381, %v373
        %v502 = vpack.c.b16 %v382, %v374
        %v503 = vpack.c.b16 %v383, %v375
        %v504 = vpack.c.b16 %v384, %v376
        %v505 = vpack.c.b16 %v385, %v377
        %v506 = vpack.c.b16 %v394, %v386
        %v507 = vpack.c.b16 %v395, %v387
        %v508 = vpack.c.b16 %v396, %v388
        %v509 = vpack.c.b16 %v397, %v389
        %v510 = vpack.c.b16 %v398, %v390
        %v511 = vpack.c.b16 %v399, %v391
        %v512 = vpack.c.b16 %v400, %v392
        %v513 = vpack.c.b16 %v401, %v393
        %v514 = vpack.c.b16 %v410, %v402
        %v515 = vpack.c.b16 %v411, %v403
        %v516 = vpack.c.b16 %v412, %v404
        %v517 = vpack.c.b16 %v413, %v405
        %v518 = vpack.c.b16 %v414, %v406
        %v519 = vpack.c.b16 %v415, %v407
        %v520 = vpack.c.b16 %v416, %v408
        %v521 = vpack.c.b16 %v417, %v409
        %v522 = vpack.c.b16 %v426, %v418
        %v523 = vpack.c.b16 %v427, %v419
        %v524 = vpack.c.b16 %v428, %v420
        %v525 = vpack.c.b16 %v429, %v421
        %v526 = vpack.c.b16 %v430, %v422
        %v527 = vpack.c.b16 %v431, %v423
        %v528 = vpack.c.b16 %v432, %v424
        %v529 = vpack.c.b16 %v433, %v425
        %v530 = vpack.c.b16 %v442, %v434
        %v531 = vpack.c.b16 %v443, %v435
        %v532 = vpack.c.b16 %v444, %v436
        %v533 = vpack.c.b16 %v445, %v437
        %v534 = vpack.c.b16 %v446, %v438
        %v535 = vpack.c.b16 %v447, %v439
        %v536 = vpack.c.b16 %v448, %v440
        %v537 = vpack.c.b16 %v449, %v441
        %v538 = vpack.c.b16 %v458, %v450
        %v539 = vpack.c.b16 %v459, %v451
        %v540 = vpack.c.b16 %v460, %v452
        %v541 = vpack.c.b16 %v461, %v453
        %v542 = vpack.c.b16 %v462, %v454
        %v543 = vpack.c.b16 %v463, %v455
        %v544 = vpack.c.b16 %v464, %v456
        %v545 = vpack.c.b16 %v465, %v457
        %v546 = vpack.c.b16 %v474, %v466
        %v547 = vpack.c.b16 %v475, %v467
        %v548 = vpack.c.b16 %v476, %v468
        %v549 = vpack.c.b16 %v477, %v469
        %v550 = vpack.c.b16 %v478, %v470
        %v551 = vpack.c.b16 %v479, %v471
        %v552 = vpack.c.b16 %v480, %v472
        %v553 = vpack.c.b16 %v481, %v473
        %v554 = vpack.c.b16 %v490, %v482
        %v555 = vpack.c.b16 %v491, %v483
        %v556 = vpack.c.b16 %v492, %v484
        %v557 = vpack.c.b16 %v493, %v485
        %v558 = vpack.c.b16 %v494, %v486
        %v559 = vpack.c.b16 %v495, %v487
        %v560 = vpack.c.b16 %v496, %v488
        %v561 = vpack.c.b16 %v497, %v489
        %626 = vmatprep.subr.bf16.mxu0 %v555
        %627 = vmatpush1.bf16.msra.mxu0 %v554
        %628 = vmatprep.subr.bf16.mxu0 %v547
        %629 = vmatpush1.bf16.msra.mxu0 %v546
        %630 = vmatprep.subr.bf16.mxu0 %v539
        %631 = vmatpush1.bf16.msra.mxu0 %v538
        %632 = vmatprep.subr.bf16.mxu0 %v531
        %633 = vmatpush1.bf16.msra.mxu0 %v530
        %634 = vmatprep.subr.bf16.mxu0 %v523
        %635 = vmatpush1.bf16.msra.mxu0 %v522
        %636 = vmatprep.subr.bf16.mxu0 %v515
        %637 = vmatpush1.bf16.msra.mxu0 %v514
        %638 = vmatprep.subr.bf16.mxu0 %v507
        %639 = vmatpush1.bf16.msra.mxu0 %v506
        %640 = vmatprep.subr.bf16.mxu0 %v499
        %641 = vmatpush1.bf16.msra.mxu0 %v498
        %642 = vmatprep.subr.bf16.mxu0 0
        %643 = vmatpush2.bf16.msra.mxu0 0
        %644 = vmatprep.subr.bf16.mxu0 0
        %645 = vmatpush2.bf16.msra.mxu0 0
        %646 = vmatprep.subr.bf16.mxu0 0
        %647 = vmatpush2.bf16.msra.mxu0 0
        %648 = vmatprep.subr.bf16.mxu0 0
        %649 = vmatpush2.bf16.msra.mxu0 0
        %650 = vmatprep.subr.bf16.mxu0 0
        %651 = vmatpush2.bf16.msra.mxu0 0
        %652 = vmatprep.subr.bf16.mxu0 0
        %653 = vmatpush2.bf16.msra.mxu0 0
        %654 = vmatprep.subr.bf16.mxu0 0
        %655 = vmatpush2.bf16.msra.mxu0 0
        %656 = vmatprep.subr.bf16.mxu0 0
        %657 = vmatpush2.bf16.msra.mxu0 0
        %658 = vmatprep.mubr.bf16.mxu0 0
        %659 = vmatmul.mubr.bf16.gmra.mxu0 %v239
        %v660 = vpop.f32.mrf.mxu0
        %v661 = vadd.f32 0.0, %v660
        %v662 = vpop.f32.mrf.mxu0
        %v663 = vadd.f32 0.0, %v662
        %v664 = vpop.f32.mrf.mxu0
        %v665 = vpop.f32.mrf.mxu0
        %666 = vdwg.mxu0
        %667 = vmatprep.subr.bf16.mxu0 %v557
        %668 = vmatpush1.bf16.msra.mxu0 %v556
        %669 = vmatprep.subr.bf16.mxu0 %v549
        %670 = vmatpush1.bf16.msra.mxu0 %v548
        %671 = vmatprep.subr.bf16.mxu0 %v541
        %672 = vmatpush1.bf16.msra.mxu0 %v540
        %673 = vmatprep.subr.bf16.mxu0 %v533
        %674 = vmatpush1.bf16.msra.mxu0 %v532
        %675 = vmatprep.subr.bf16.mxu0 %v525
        %676 = vmatpush1.bf16.msra.mxu0 %v524
        %677 = vmatprep.subr.bf16.mxu0 %v517
        %678 = vmatpush1.bf16.msra.mxu0 %v516
        %679 = vmatprep.subr.bf16.mxu0 %v509
        %680 = vmatpush1.bf16.msra.mxu0 %v508
        %681 = vmatprep.subr.bf16.mxu0 %v501
        %682 = vmatpush1.bf16.msra.mxu0 %v500
        %683 = vmatprep.subr.bf16.mxu0 0
        %684 = vmatpush2.bf16.msra.mxu0 0
        %685 = vmatprep.subr.bf16.mxu0 0
        %686 = vmatpush2.bf16.msra.mxu0 0
        %687 = vmatprep.subr.bf16.mxu0 0
        %688 = vmatpush2.bf16.msra.mxu0 0
        %689 = vmatprep.subr.bf16.mxu0 0
        %690 = vmatpush2.bf16.msra.mxu0 0
        %691 = vmatprep.subr.bf16.mxu0 0
        %692 = vmatpush2.bf16.msra.mxu0 0
        %693 = vmatprep.subr.bf16.mxu0 0
        %694 = vmatpush2.bf16.msra.mxu0 0
        %695 = vmatprep.subr.bf16.mxu0 0
        %696 = vmatpush2.bf16.msra.mxu0 0
        %697 = vmatprep.subr.bf16.mxu0 0
        %698 = vmatpush2.bf16.msra.mxu0 0
        %699 = vmatprep.mubr.bf16.mxu0 0
        %700 = vmatmul.mubr.bf16.gmra.mxu0 %v239
        %v701 = vpop.f32.mrf.mxu0
        %v702 = vadd.f32 0.0, %v701
        %v703 = vpop.f32.mrf.mxu0
        %v704 = vadd.f32 0.0, %v703
        %v705 = vpop.f32.mrf.mxu0
        %v706 = vpop.f32.mrf.mxu0
        %707 = vdwg.mxu0
        %708 = vmatprep.subr.bf16.mxu0 %v559
        %709 = vmatpush1.bf16.msra.mxu0 %v558
        %710 = vmatprep.subr.bf16.mxu0 %v551
        %711 = vmatpush1.bf16.msra.mxu0 %v550
        %712 = vmatprep.subr.bf16.mxu0 %v543
        %713 = vmatpush1.bf16.msra.mxu0 %v542
        %714 = vmatprep.subr.bf16.mxu0 %v535
        %715 = vmatpush1.bf16.msra.mxu0 %v534
        %716 = vmatprep.subr.bf16.mxu0 %v527
        %717 = vmatpush1.bf16.msra.mxu0 %v526
        %718 = vmatprep.subr.bf16.mxu0 %v519
        %719 = vmatpush1.bf16.msra.mxu0 %v518
        %720 = vmatprep.subr.bf16.mxu0 %v511
        %721 = vmatpush1.bf16.msra.mxu0 %v510
        %722 = vmatprep.subr.bf16.mxu0 %v503
        %723 = vmatpush1.bf16.msra.mxu0 %v502
        %724 = vmatprep.subr.bf16.mxu0 0
        %725 = vmatpush2.bf16.msra.mxu0 0
        %726 = vmatprep.subr.bf16.mxu0 0
        %727 = vmatpush2.bf16.msra.mxu0 0
        %728 = vmatprep.subr.bf16.mxu0 0
        %729 = vmatpush2.bf16.msra.mxu0 0
        %730 = vmatprep.subr.bf16.mxu0 0
        %731 = vmatpush2.bf16.msra.mxu0 0
        %732 = vmatprep.subr.bf16.mxu0 0
        %733 = vmatpush2.bf16.msra.mxu0 0
        %734 = vmatprep.subr.bf16.mxu0 0
        %735 = vmatpush2.bf16.msra.mxu0 0
        %736 = vmatprep.subr.bf16.mxu0 0
        %737 = vmatpush2.bf16.msra.mxu0 0
        %738 = vmatprep.subr.bf16.mxu0 0
        %739 = vmatpush2.bf16.msra.mxu0 0
        %740 = vmatprep.mubr.bf16.mxu0 0
        %741 = vmatmul.mubr.bf16.gmra.mxu0 %v239
        %v742 = vpop.f32.mrf.mxu0
        %v743 = vadd.f32 0.0, %v742
        %v744 = vpop.f32.mrf.mxu0
        %v745 = vadd.f32 0.0, %v744
        %v746 = vpop.f32.mrf.mxu0
        %v747 = vpop.f32.mrf.mxu0
        %748 = vdwg.mxu0
        %749 = vmatprep.subr.bf16.mxu0 %v561
        %750 = vmatpush1.bf16.msra.mxu0 %v560
        %751 = vmatprep.subr.bf16.mxu0 %v553
        %752 = vmatpush1.bf16.msra.mxu0 %v552
        %753 = vmatprep.subr.bf16.mxu0 %v545
        %754 = vmatpush1.bf16.msra.mxu0 %v544
        %755 = vmatprep.subr.bf16.mxu0 %v537
        %756 = vmatpush1.bf16.msra.mxu0 %v536
        %757 = vmatprep.subr.bf16.mxu0 %v529
        %758 = vmatpush1.bf16.msra.mxu0 %v528
        %759 = vmatprep.subr.bf16.mxu0 %v521
        %760 = vmatpush1.bf16.msra.mxu0 %v520
        %761 = vmatprep.subr.bf16.mxu0 %v513
        %762 = vmatpush1.bf16.msra.mxu0 %v512
        %763 = vmatprep.subr.bf16.mxu0 %v505
        %764 = vmatpush1.bf16.msra.mxu0 %v504
        %765 = vmatprep.subr.bf16.mxu0 0
        %766 = vmatpush2.bf16.msra.mxu0 0
        %767 = vmatprep.subr.bf16.mxu0 0
        %768 = vmatpush2.bf16.msra.mxu0 0
        %769 = vmatprep.subr.bf16.mxu0 0
        %770 = vmatpush2.bf16.msra.mxu0 0
        %771 = vmatprep.subr.bf16.mxu0 0
        %772 = vmatpush2.bf16.msra.mxu0 0
        %773 = vmatprep.subr.bf16.mxu0 0
        %774 = vmatpush2.bf16.msra.mxu0 0
        %775 = vmatprep.subr.bf16.mxu0 0
        %776 = vmatpush2.bf16.msra.mxu0 0
        %777 = vmatprep.subr.bf16.mxu0 0
        %778 = vmatpush2.bf16.msra.mxu0 0
        %779 = vmatprep.subr.bf16.mxu0 0
        %780 = vmatpush2.bf16.msra.mxu0 0
        %781 = vmatprep.mubr.bf16.mxu0 0
        %782 = vmatmul.mubr.bf16.gmra.mxu0 %v239
        %v783 = vpop.f32.mrf.mxu0
        %v784 = vadd.f32 0.0, %v783
        %v785 = vpop.f32.mrf.mxu0
        %v786 = vadd.f32 0.0, %v785
        %v787 = vpop.f32.mrf.mxu0
        %v788 = vpop.f32.mrf.mxu0
        %789 = vdwg.mxu0
        %v790 = vpack.c.bf16 %v661, %v661
        %v791 = vpack.c.bf16 %v663, %v663
        %v792 = vpack.c.bf16 %v702, %v702
        %v793 = vpack.c.bf16 %v704, %v704
        %v794 = vpack.c.bf16 %v743, %v743
        %v795 = vpack.c.bf16 %v745, %v745
        %v796 = vpack.c.bf16 %v784, %v784
        %v797 = vpack.c.bf16 %v786, %v786
        %798 = vmatprep.subr.bf16.mxu0 0
        %799 = vmatpush1.bf16.xpose.msra.mxu0 0
        %800 = vmatprep.subr.bf16.mxu0 0
        %801 = vmatpush1.bf16.xpose.msra.mxu0 0
        %802 = vmatprep.subr.bf16.mxu0 0
        %803 = vmatpush1.bf16.xpose.msra.mxu0 0
        %804 = vmatprep.subr.bf16.mxu0 0
        %805 = vmatpush1.bf16.xpose.msra.mxu0 0
        %806 = vmatprep.subr.bf16.mxu0 0
        %807 = vmatpush1.bf16.xpose.msra.mxu0 0
        %808 = vmatprep.subr.bf16.mxu0 0
        %809 = vmatpush1.bf16.xpose.msra.mxu0 0
        %810 = vmatprep.subr.bf16.mxu0 0
        %811 = vmatpush1.bf16.xpose.msra.mxu0 0
        %812 = vmatprep.subr.bf16.mxu0 0
        %813 = vmatpush1.bf16.xpose.msra.mxu0 %v241
        %814 = vmatprep.subr.bf16.mxu0 0
        %815 = vmatpush2.bf16.xpose.msra.mxu0 0
        %816 = vmatprep.subr.bf16.mxu0 0
        %817 = vmatpush2.bf16.xpose.msra.mxu0 0
        %818 = vmatprep.subr.bf16.mxu0 0
        %819 = vmatpush2.bf16.xpose.msra.mxu0 0
        %820 = vmatprep.subr.bf16.mxu0 0
        %821 = vmatpush2.bf16.xpose.msra.mxu0 0
        %822 = vmatprep.subr.bf16.mxu0 0
        %823 = vmatpush2.bf16.xpose.msra.mxu0 0
        %824 = vmatprep.subr.bf16.mxu0 0
        %825 = vmatpush2.bf16.xpose.msra.mxu0 0
        %826 = vmatprep.subr.bf16.mxu0 0
        %827 = vmatpush2.bf16.xpose.msra.mxu0 0
        %828 = vmatprep.subr.bf16.mxu0 0
        %829 = vmatpush2.bf16.xpose.msra.mxu0 0
        %830 = vmatprep.mubr.bf16.mxu0 0
        %831 = vmatmul.mubr.bf16.gmra.mxu0 %v790
        %v832 = vpop.f32.mrf.mxu0
        %v833 = vadd.f32 0.0, %v832
        %v834 = vpop.f32.mrf.mxu0
        %v835 = vpop.f32.mrf.mxu0
        %v836 = vpop.f32.mrf.mxu0
        %837 = vdwg.mxu0
        %vm838 = vcmask 64512
        %839 = vst.msk [vmem:[%s212] sm:$0xff] %vm838, %v833
        %840 = vmatprep.subr.bf16.mxu0 0
        %841 = vmatpush1.bf16.xpose.msra.mxu0 0
        %842 = vmatprep.subr.bf16.mxu0 0
        %843 = vmatpush1.bf16.xpose.msra.mxu0 0
        %844 = vmatprep.subr.bf16.mxu0 0
        %845 = vmatpush1.bf16.xpose.msra.mxu0 0
        %846 = vmatprep.subr.bf16.mxu0 0
        %847 = vmatpush1.bf16.xpose.msra.mxu0 0
        %848 = vmatprep.subr.bf16.mxu0 0
        %849 = vmatpush1.bf16.xpose.msra.mxu0 0
        %850 = vmatprep.subr.bf16.mxu0 0
        %851 = vmatpush1.bf16.xpose.msra.mxu0 0
        %852 = vmatprep.subr.bf16.mxu0 0
        %853 = vmatpush1.bf16.xpose.msra.mxu0 0
        %854 = vmatprep.subr.bf16.mxu0 0
        %855 = vmatpush1.bf16.xpose.msra.mxu0 %v241
        %856 = vmatprep.subr.bf16.mxu0 0
        %857 = vmatpush2.bf16.xpose.msra.mxu0 0
        %858 = vmatprep.subr.bf16.mxu0 0
        %859 = vmatpush2.bf16.xpose.msra.mxu0 0
        %860 = vmatprep.subr.bf16.mxu0 0
        %861 = vmatpush2.bf16.xpose.msra.mxu0 0
        %862 = vmatprep.subr.bf16.mxu0 0
        %863 = vmatpush2.bf16.xpose.msra.mxu0 0
        %864 = vmatprep.subr.bf16.mxu0 0
        %865 = vmatpush2.bf16.xpose.msra.mxu0 0
        %866 = vmatprep.subr.bf16.mxu0 0
        %867 = vmatpush2.bf16.xpose.msra.mxu0 0
        %868 = vmatprep.subr.bf16.mxu0 0
        %869 = vmatpush2.bf16.xpose.msra.mxu0 0
        %870 = vmatprep.subr.bf16.mxu0 0
        %871 = vmatpush2.bf16.xpose.msra.mxu0 0
        %872 = vmatprep.mubr.bf16.mxu0 0
        %873 = vmatmul.mubr.bf16.gmra.mxu0 %v791
        %v874 = vpop.f32.mrf.mxu0
        %v875 = vadd.f32 0.0, %v874
        %v876 = vpop.f32.mrf.mxu0
        %v877 = vpop.f32.mrf.mxu0
        %v878 = vpop.f32.mrf.mxu0
        %879 = vdwg.mxu0
        %s880 = scalar_lea.vmem %s212, 8 [#allocation2]
        %881 = vst.msk [vmem:[%s880] sm:$0xff] %vm838, %v875
        %882 = vmatprep.subr.bf16.mxu0 0
        %883 = vmatpush1.bf16.xpose.msra.mxu0 0
        %884 = vmatprep.subr.bf16.mxu0 0
        %885 = vmatpush1.bf16.xpose.msra.mxu0 0
        %886 = vmatprep.subr.bf16.mxu0 0
        %887 = vmatpush1.bf16.xpose.msra.mxu0 0
        %888 = vmatprep.subr.bf16.mxu0 0
        %889 = vmatpush1.bf16.xpose.msra.mxu0 0
        %890 = vmatprep.subr.bf16.mxu0 0
        %891 = vmatpush1.bf16.xpose.msra.mxu0 0
        %892 = vmatprep.subr.bf16.mxu0 0
        %893 = vmatpush1.bf16.xpose.msra.mxu0 0
        %894 = vmatprep.subr.bf16.mxu0 0
        %895 = vmatpush1.bf16.xpose.msra.mxu0 0
        %896 = vmatprep.subr.bf16.mxu0 0
        %897 = vmatpush1.bf16.xpose.msra.mxu0 %v241
        %898 = vmatprep.subr.bf16.mxu0 0
        %899 = vmatpush2.bf16.xpose.msra.mxu0 0
        %900 = vmatprep.subr.bf16.mxu0 0
        %901 = vmatpush2.bf16.xpose.msra.mxu0 0
        %902 = vmatprep.subr.bf16.mxu0 0
        %903 = vmatpush2.bf16.xpose.msra.mxu0 0
        %904 = vmatprep.subr.bf16.mxu0 0
        %905 = vmatpush2.bf16.xpose.msra.mxu0 0
        %906 = vmatprep.subr.bf16.mxu0 0
        %907 = vmatpush2.bf16.xpose.msra.mxu0 0
        %908 = vmatprep.subr.bf16.mxu0 0
        %909 = vmatpush2.bf16.xpose.msra.mxu0 0
        %910 = vmatprep.subr.bf16.mxu0 0
        %911 = vmatpush2.bf16.xpose.msra.mxu0 0
        %912 = vmatprep.subr.bf16.mxu0 0
        %913 = vmatpush2.bf16.xpose.msra.mxu0 0
        %914 = vmatprep.mubr.bf16.mxu0 0
        %915 = vmatmul.mubr.bf16.gmra.mxu0 %v792
        %v916 = vpop.f32.mrf.mxu0
        %v917 = vadd.f32 0.0, %v916
        %v918 = vpop.f32.mrf.mxu0
        %v919 = vpop.f32.mrf.mxu0
        %v920 = vpop.f32.mrf.mxu0
        %921 = vdwg.mxu0
        %s922 = scalar_lea.vmem %s212, 16 [#allocation2]
        %923 = vst.msk [vmem:[%s922] sm:$0xff] %vm838, %v917
        %924 = vmatprep.subr.bf16.mxu0 0
        %925 = vmatpush1.bf16.xpose.msra.mxu0 0
        %926 = vmatprep.subr.bf16.mxu0 0
        %927 = vmatpush1.bf16.xpose.msra.mxu0 0
        %928 = vmatprep.subr.bf16.mxu0 0
        %929 = vmatpush1.bf16.xpose.msra.mxu0 0
        %930 = vmatprep.subr.bf16.mxu0 0
        %931 = vmatpush1.bf16.xpose.msra.mxu0 0
        %932 = vmatprep.subr.bf16.mxu0 0
        %933 = vmatpush1.bf16.xpose.msra.mxu0 0
        %934 = vmatprep.subr.bf16.mxu0 0
        %935 = vmatpush1.bf16.xpose.msra.mxu0 0
        %936 = vmatprep.subr.bf16.mxu0 0
        %937 = vmatpush1.bf16.xpose.msra.mxu0 0
        %938 = vmatprep.subr.bf16.mxu0 0
        %939 = vmatpush1.bf16.xpose.msra.mxu0 %v241
        %940 = vmatprep.subr.bf16.mxu0 0
        %941 = vmatpush2.bf16.xpose.msra.mxu0 0
        %942 = vmatprep.subr.bf16.mxu0 0
        %943 = vmatpush2.bf16.xpose.msra.mxu0 0
        %944 = vmatprep.subr.bf16.mxu0 0
        %945 = vmatpush2.bf16.xpose.msra.mxu0 0
        %946 = vmatprep.subr.bf16.mxu0 0
        %947 = vmatpush2.bf16.xpose.msra.mxu0 0
        %948 = vmatprep.subr.bf16.mxu0 0
        %949 = vmatpush2.bf16.xpose.msra.mxu0 0
        %950 = vmatprep.subr.bf16.mxu0 0
        %951 = vmatpush2.bf16.xpose.msra.mxu0 0
        %952 = vmatprep.subr.bf16.mxu0 0
        %953 = vmatpush2.bf16.xpose.msra.mxu0 0
        %954 = vmatprep.subr.bf16.mxu0 0
        %955 = vmatpush2.bf16.xpose.msra.mxu0 0
        %956 = vmatprep.mubr.bf16.mxu0 0
        %957 = vmatmul.mubr.bf16.gmra.mxu0 %v793
        %v958 = vpop.f32.mrf.mxu0
        %v959 = vadd.f32 0.0, %v958
        %v960 = vpop.f32.mrf.mxu0
        %v961 = vpop.f32.mrf.mxu0
        %v962 = vpop.f32.mrf.mxu0
        %963 = vdwg.mxu0
        %s964 = scalar_lea.vmem %s212, 24 [#allocation2]
        %965 = vst.msk [vmem:[%s964] sm:$0xff] %vm838, %v959
        %966 = vmatprep.subr.bf16.mxu0 0
        %967 = vmatpush1.bf16.xpose.msra.mxu0 0
        %968 = vmatprep.subr.bf16.mxu0 0
        %969 = vmatpush1.bf16.xpose.msra.mxu0 0
        %970 = vmatprep.subr.bf16.mxu0 0
        %971 = vmatpush1.bf16.xpose.msra.mxu0 0
        %972 = vmatprep.subr.bf16.mxu0 0
        %973 = vmatpush1.bf16.xpose.msra.mxu0 0
        %974 = vmatprep.subr.bf16.mxu0 0
        %975 = vmatpush1.bf16.xpose.msra.mxu0 0
        %976 = vmatprep.subr.bf16.mxu0 0
        %977 = vmatpush1.bf16.xpose.msra.mxu0 0
        %978 = vmatprep.subr.bf16.mxu0 0
        %979 = vmatpush1.bf16.xpose.msra.mxu0 0
        %980 = vmatprep.subr.bf16.mxu0 0
        %981 = vmatpush1.bf16.xpose.msra.mxu0 %v241
        %982 = vmatprep.subr.bf16.mxu0 0
        %983 = vmatpush2.bf16.xpose.msra.mxu0 0
        %984 = vmatprep.subr.bf16.mxu0 0
        %985 = vmatpush2.bf16.xpose.msra.mxu0 0
        %986 = vmatprep.subr.bf16.mxu0 0
        %987 = vmatpush2.bf16.xpose.msra.mxu0 0
        %988 = vmatprep.subr.bf16.mxu0 0
        %989 = vmatpush2.bf16.xpose.msra.mxu0 0
        %990 = vmatprep.subr.bf16.mxu0 0
        %991 = vmatpush2.bf16.xpose.msra.mxu0 0
        %992 = vmatprep.subr.bf16.mxu0 0
        %993 = vmatpush2.bf16.xpose.msra.mxu0 0
        %994 = vmatprep.subr.bf16.mxu0 0
        %995 = vmatpush2.bf16.xpose.msra.mxu0 0
        %996 = vmatprep.subr.bf16.mxu0 0
        %997 = vmatpush2.bf16.xpose.msra.mxu0 0
        %998 = vmatprep.mubr.bf16.mxu0 0
        %999 = vmatmul.mubr.bf16.gmra.mxu0 %v794
        %v1000 = vpop.f32.mrf.mxu0
        %v1001 = vadd.f32 0.0, %v1000
        %v1002 = vpop.f32.mrf.mxu0
        %v1003 = vpop.f32.mrf.mxu0
        %v1004 = vpop.f32.mrf.mxu0
        %1005 = vdwg.mxu0
        %s1006 = scalar_lea.vmem %s212, 32 [#allocation2]
        %1007 = vst.msk [vmem:[%s1006] sm:$0xff] %vm838, %v1001
        %1008 = vmatprep.subr.bf16.mxu0 0
        %1009 = vmatpush1.bf16.xpose.msra.mxu0 0
        %1010 = vmatprep.subr.bf16.mxu0 0
        %1011 = vmatpush1.bf16.xpose.msra.mxu0 0
        %1012 = vmatprep.subr.bf16.mxu0 0
        %1013 = vmatpush1.bf16.xpose.msra.mxu0 0
        %1014 = vmatprep.subr.bf16.mxu0 0
        %1015 = vmatpush1.bf16.xpose.msra.mxu0 0
        %1016 = vmatprep.subr.bf16.mxu0 0
        %1017 = vmatpush1.bf16.xpose.msra.mxu0 0
        %1018 = vmatprep.subr.bf16.mxu0 0
        %1019 = vmatpush1.bf16.xpose.msra.mxu0 0
        %1020 = vmatprep.subr.bf16.mxu0 0
        %1021 = vmatpush1.bf16.xpose.msra.mxu0 0
        %1022 = vmatprep.subr.bf16.mxu0 0
        %1023 = vmatpush1.bf16.xpose.msra.mxu0 %v241
        %1024 = vmatprep.subr.bf16.mxu0 0
        %1025 = vmatpush2.bf16.xpose.msra.mxu0 0
        %1026 = vmatprep.subr.bf16.mxu0 0
        %1027 = vmatpush2.bf16.xpose.msra.mxu0 0
        %1028 = vmatprep.subr.bf16.mxu0 0
        %1029 = vmatpush2.bf16.xpose.msra.mxu0 0
        %1030 = vmatprep.subr.bf16.mxu0 0
        %1031 = vmatpush2.bf16.xpose.msra.mxu0 0
        %1032 = vmatprep.subr.bf16.mxu0 0
        %1033 = vmatpush2.bf16.xpose.msra.mxu0 0
        %1034 = vmatprep.subr.bf16.mxu0 0
        %1035 = vmatpush2.bf16.xpose.msra.mxu0 0
        %1036 = vmatprep.subr.bf16.mxu0 0
        %1037 = vmatpush2.bf16.xpose.msra.mxu0 0
        %1038 = vmatprep.subr.bf16.mxu0 0
        %1039 = vmatpush2.bf16.xpose.msra.mxu0 0
        %1040 = vmatprep.mubr.bf16.mxu0 0
        %1041 = vmatmul.mubr.bf16.gmra.mxu0 %v795
        %v1042 = vpop.f32.mrf.mxu0
        %v1043 = vadd.f32 0.0, %v1042
        %v1044 = vpop.f32.mrf.mxu0
        %v1045 = vpop.f32.mrf.mxu0
        %v1046 = vpop.f32.mrf.mxu0
        %1047 = vdwg.mxu0
        %s1048 = scalar_lea.vmem %s212, 40 [#allocation2]
        %1049 = vst.msk [vmem:[%s1048] sm:$0xff] %vm838, %v1043
        %1050 = vmatprep.subr.bf16.mxu0 0
        %1051 = vmatpush1.bf16.xpose.msra.mxu0 0
        %1052 = vmatprep.subr.bf16.mxu0 0
        %1053 = vmatpush1.bf16.xpose.msra.mxu0 0
        %1054 = vmatprep.subr.bf16.mxu0 0
        %1055 = vmatpush1.bf16.xpose.msra.mxu0 0
        %1056 = vmatprep.subr.bf16.mxu0 0
        %1057 = vmatpush1.bf16.xpose.msra.mxu0 0
        %1058 = vmatprep.subr.bf16.mxu0 0
        %1059 = vmatpush1.bf16.xpose.msra.mxu0 0
        %1060 = vmatprep.subr.bf16.mxu0 0
        %1061 = vmatpush1.bf16.xpose.msra.mxu0 0
        %1062 = vmatprep.subr.bf16.mxu0 0
        %1063 = vmatpush1.bf16.xpose.msra.mxu0 0
        %1064 = vmatprep.subr.bf16.mxu0 0
        %1065 = vmatpush1.bf16.xpose.msra.mxu0 %v241
        %1066 = vmatprep.subr.bf16.mxu0 0
        %1067 = vmatpush2.bf16.xpose.msra.mxu0 0
        %1068 = vmatprep.subr.bf16.mxu0 0
        %1069 = vmatpush2.bf16.xpose.msra.mxu0 0
        %1070 = vmatprep.subr.bf16.mxu0 0
        %1071 = vmatpush2.bf16.xpose.msra.mxu0 0
        %1072 = vmatprep.subr.bf16.mxu0 0
        %1073 = vmatpush2.bf16.xpose.msra.mxu0 0
        %1074 = vmatprep.subr.bf16.mxu0 0
        %1075 = vmatpush2.bf16.xpose.msra.mxu0 0
        %1076 = vmatprep.subr.bf16.mxu0 0
        %1077 = vmatpush2.bf16.xpose.msra.mxu0 0
        %1078 = vmatprep.subr.bf16.mxu0 0
        %1079 = vmatpush2.bf16.xpose.msra.mxu0 0
        %1080 = vmatprep.subr.bf16.mxu0 0
        %1081 = vmatpush2.bf16.xpose.msra.mxu0 0
        %1082 = vmatprep.mubr.bf16.mxu0 0
        %1083 = vmatmul.mubr.bf16.gmra.mxu0 %v796
        %v1084 = vpop.f32.mrf.mxu0
        %v1085 = vadd.f32 0.0, %v1084
        %v1086 = vpop.f32.mrf.mxu0
        %v1087 = vpop.f32.mrf.mxu0
        %v1088 = vpop.f32.mrf.mxu0
        %1089 = vdwg.mxu0
        %s1090 = scalar_lea.vmem %s212, 48 [#allocation2]
        %1091 = vst.msk [vmem:[%s1090] sm:$0xff] %vm838, %v1085
        %1092 = vmatprep.subr.bf16.mxu0 0
        %1093 = vmatpush1.bf16.xpose.msra.mxu0 0
        %1094 = vmatprep.subr.bf16.mxu0 0
        %1095 = vmatpush1.bf16.xpose.msra.mxu0 0
        %1096 = vmatprep.subr.bf16.mxu0 0
        %1097 = vmatpush1.bf16.xpose.msra.mxu0 0
        %1098 = vmatprep.subr.bf16.mxu0 0
        %1099 = vmatpush1.bf16.xpose.msra.mxu0 0
        %1100 = vmatprep.subr.bf16.mxu0 0
        %1101 = vmatpush1.bf16.xpose.msra.mxu0 0
        %1102 = vmatprep.subr.bf16.mxu0 0
        %1103 = vmatpush1.bf16.xpose.msra.mxu0 0
        %1104 = vmatprep.subr.bf16.mxu0 0
        %1105 = vmatpush1.bf16.xpose.msra.mxu0 0
        %1106 = vmatprep.subr.bf16.mxu0 0
        %1107 = vmatpush1.bf16.xpose.msra.mxu0 %v241
        %1108 = vmatprep.subr.bf16.mxu0 0
        %1109 = vmatpush2.bf16.xpose.msra.mxu0 0
        %1110 = vmatprep.subr.bf16.mxu0 0
        %1111 = vmatpush2.bf16.xpose.msra.mxu0 0
        %1112 = vmatprep.subr.bf16.mxu0 0
        %1113 = vmatpush2.bf16.xpose.msra.mxu0 0
        %1114 = vmatprep.subr.bf16.mxu0 0
        %1115 = vmatpush2.bf16.xpose.msra.mxu0 0
        %1116 = vmatprep.subr.bf16.mxu0 0
        %1117 = vmatpush2.bf16.xpose.msra.mxu0 0
        %1118 = vmatprep.subr.bf16.mxu0 0
        %1119 = vmatpush2.bf16.xpose.msra.mxu0 0
        %1120 = vmatprep.subr.bf16.mxu0 0
        %1121 = vmatpush2.bf16.xpose.msra.mxu0 0
        %1122 = vmatprep.subr.bf16.mxu0 0
        %1123 = vmatpush2.bf16.xpose.msra.mxu0 0
        %1124 = vmatprep.mubr.bf16.mxu0 0
        %1125 = vmatmul.mubr.bf16.gmra.mxu0 %v797
        %v1126 = vpop.f32.mrf.mxu0
        %v1127 = vadd.f32 0.0, %v1126
        %v1128 = vpop.f32.mrf.mxu0
        %v1129 = vpop.f32.mrf.mxu0
        %v1130 = vpop.f32.mrf.mxu0
        %1131 = vdwg.mxu0
        %s1132 = scalar_lea.vmem %s212, 56 [#allocation2]
        %1133 = vst.msk [vmem:[%s1132] sm:$0xff] %vm838, %v1127
        %s1134 = sand.u32 %s117, 1
        %s1135 = scalar_lea.sflag [#allocation3], %s1134
        %s1136 = sand.u32 %s117, 1
        %s1137 = smul.addr %s1136, 64
        %s1138 = scalar_lea.vmem [#allocation2], %s1137
        // Predicated region
        $region33: #{camembert_for_parsing_forward.5} parent=31 // pred_check
          %p1139 = pneg %p127
        $region34: #{camembert_for_parsing_forward.5} parent=31 // pred_check_branch
          %1141 = sbr.rel (%p1139) target = $region36
        $region35: #{camembert_for_parsing_forward.5} parent=31 // pred_region
          %s1142 = smul.u32 8, %s22
          %s1144 = ssub.s32 1024, 1024
          %1145 = vsyncadd %s1135, %s1144
          %s1146 = smul.addr %s21, 8
          %s1147 = sadd.s32 %s1142, %s1146
          %s1148 = smul.addr %s1147, 128
          %s1149 = scalar_lea.hbm %s3, %s1148
          %s1150 = sshll.u32 %s1138, 4
          %s1151 = int_to_ptr.vmem [resolvable:$true] %s1150
          %1156 = dma.vmem_to_hbm [thread:$0]  %s1151, 1024, %s1149, %s1135, 128, 128, 8
        $region36: #{camembert_for_parsing_forward.5} parent=31 // pred_fallthru
          _
      $region32: #{camembert_for_parsing_forward.5} parent=5 // pred_fallthru
        _
      %p1157 = scmp.le.s32.totalorder 2, %s12
      // Predicated region
      $region37: #{camembert_for_parsing_forward.5} parent=5 // pred_check
        %p1158 = pneg %p1157
      $region38: #{camembert_for_parsing_forward.5} parent=5 // pred_check_branch
        %1160 = sbr.rel (%p1158) target = $region40
      $region39: #{camembert_for_parsing_forward.5} parent=5 // pred_region
        %s1161 = ssub.s32 %s12, 2
        // Predicated region
        $region41: #{camembert_for_parsing_forward.5} parent=39 // pred_check
          %p1162 = pneg %p133
        $region42: #{camembert_for_parsing_forward.5} parent=39 // pred_check_branch
          %1164 = sbr.rel (%p1162) target = $region44
        $region43: #{camembert_for_parsing_forward.5} parent=39 // pred_region
          %s1165 = sand.u32 %s118, 1
          %s1166 = scalar_lea.sflag [#allocation3], %s1165
          %s1167 = sand.u32 %s118, 1
          %s1168 = smul.addr %s1167, 64
          %s1169 = scalar_lea.vmem [#allocation2], %s1168
          %1170 = dma.done %s1166, 1024
        $region44: #{camembert_for_parsing_forward.5} parent=39 // pred_fallthru
          _
      $region40: #{camembert_for_parsing_forward.5} parent=5 // pred_fallthru
        _
    $region6: #{camembert_for_parsing_forward.5} parent=1 // loop_footer
      %s16 = sadd.s32 1, %s12
    $region7: #{camembert_for_parsing_forward.5} parent=1 // loop_footer_branch
      %11 = sbr.rel target = $region3
    $region8: #{camembert_for_parsing_forward.5} parent=1 // loop_exit
      _
    %1171 = vsyncpa [#allocation3], 1
    %s1172 = scalar_lea.sflag [#allocation3], 1
    %1173 = vsyncpa %s1172, 1

</llo_original>
